<compile_context>
chip_gen: v7x
topology: tpu7x:2x2x1
jax: 0.10.0
libtpu: 0.0.40
codegen_flags: <defaults>
</compile_context>

<pallas_src>
import numpy as np
import jax
import jax.numpy as jnp
from jax.experimental import pallas as pl
from jax.experimental.pallas import tpu as pltpu


def _softmax_last(v):
    """Row softmax; the divide goes to the EUP via approximate reciprocal."""
    v = v - jnp.max(v, axis=-1, keepdims=True)
    e = jnp.exp(v)
    return e * pl.reciprocal(jnp.sum(e, axis=-1, keepdims=True), approx=True)


def _neural_lp_kernel(x_ref, head_ref, tail_ref, w0_ref, whh0_ref, wf_ref,
                      bias_ref, kb2d_ref, out_ref):
    f32, bf16 = jnp.float32, jnp.bfloat16
    B, Ep = head_ref.shape              # padded batch, lane-padded entity dim
    T = bias_ref.shape[0]               # num_step == num LSTM layers == seq len
    R = whh0_ref.shape[0]               # num_relation == LSTM hidden size
    G = bias_ref.shape[-1]              # 4 * 128 (gate-aligned gate width)
    GS = G // 4                         # per-gate lane stride (128)

    x_bf = x_ref[...]                   # (B, D_in) bf16
    kb2d = kb2d_ref[...]                # (Ep, R*Ep) bf16

    # ---- hoisted, t-invariant work ----
    gi0 = jnp.dot(x_bf, w0_ref[...], preferred_element_type=f32)     # (B, G)
    whh0 = whh0_ref[...]                                             # (R, G)
    wf_layers = [wf_ref[l] for l in range(T - 1)]                    # (2R, G) each
    # bias pre-broadcast once per layer, outside the t-loop
    bias_layers = [jnp.broadcast_to(bias_ref[l], (B, G)) for l in range(T)]

    def lstm_cell(g, c_prev):
        # gate order [i, f, g, o]; each gate starts at a 128-aligned lane offset
        i_g = jax.nn.sigmoid(g[:, 0 * GS:0 * GS + R])
        f_g = jax.nn.sigmoid(g[:, 1 * GS:1 * GS + R])
        g_g = jnp.tanh(g[:, 2 * GS:2 * GS + R])
        o_g = jax.nn.sigmoid(g[:, 3 * GS:3 * GS + R])
        c_new = f_g * c_prev + i_g * g_g
        h_new = o_g * jnp.tanh(c_new)
        return h_new, c_new

    # ---- multi-layer LSTM over T identical time-steps (state in vregs) ----
    h = [jnp.zeros((B, R), f32) for _ in range(T)]
    c = [jnp.zeros((B, R), f32) for _ in range(T)]
    hs = []
    for t in range(T):
        # layer 0: skip the zero input-half; x-contribution is the hoisted gi0
        g = gi0 + jnp.dot(h[0].astype(bf16), whh0,
                          preferred_element_type=f32) + bias_layers[0]
        h[0], c[0] = lstm_cell(g, c[0])
        for l in range(1, T):
            cat = jnp.concatenate([h[l - 1].astype(bf16),
                                   h[l].astype(bf16)], axis=1)        # (B, 2R)
            g = jnp.dot(cat, wf_layers[l - 1],
                        preferred_element_type=f32) + bias_layers[l]
            h[l], c[l] = lstm_cell(g, c[l])
        hs.append(_softmax_last(h[T - 1]))      # first softmax (as in reference)

    # ---- Neural-LP memory recursion (state stays in vregs) ----
    mem = [head_ref[...]]                       # (B, Ep) f32; zero beyond E
    for i in range(T):
        w = _softmax_last(hs[i])                # second softmax (matches PyTorch)

        # attention over previous steps 0..i only (no mask, no scratch reload)
        s = [jnp.sum(hs[k] * hs[i], axis=-1, keepdims=True) for k in range(i + 1)]
        m = s[0]
        for k in range(1, i + 1):
            m = jnp.maximum(m, s[k])
        e = [jnp.exp(sk - m) for sk in s]
        denom = e[0]
        for k in range(1, i + 1):
            denom = denom + e[k]
        inv = pl.reciprocal(denom, approx=True)                      # (B, 1)

        pwm = (e[0] * inv) * mem[0]
        for k in range(1, i + 1):
            pwm = pwm + (e[k] * inv) * mem[k]                        # (B, Ep)

        # KB-operator mixing: one MXU matmul; z slices are 128-lane aligned
        z = jnp.dot(pwm.astype(bf16), kb2d, preferred_element_type=f32)  # (B, R*Ep)
        new_mem = w[:, 0:1] * z[:, 0:Ep]
        for r in range(1, R):
            new_mem = new_mem + w[:, r:r + 1] * z[:, r * Ep:(r + 1) * Ep]
        mem.append(new_mem)

    score = jnp.sum(mem[T] * tail_ref[...], axis=-1, keepdims=True)  # (B, 1)
    # lane-dense output slab; wrapper slices column 0
    out_ref[...] = jnp.broadcast_to(jnp.tanh(score), out_ref.shape)


def neural_lp_forward(x, kb, Wih, Whh, bih, bhh):
    """Wrapper: host-side layout plumbing + single pallas_call."""
    B, D_in = x.shape
    R, E, _ = kb.shape
    T = len(Wih)
    bf16 = jnp.bfloat16

    GS = 128                      # per-gate lane stride (gate alignment)
    G = 4 * GS                    # gate-aligned matmul N
    Ep = 128                      # lane-padded entity dim
    Bp = ((B + 7) // 8) * 8       # batch padded to f32 sublane multiple (>= 8)
    assert R <= GS and E <= Ep, "toy-shape kernel assumes R,E <= 128"

    def gate_align(w_t):          # (in_dim, 4R) -> (in_dim, G), gate k at k*GS
        in_dim = w_t.shape[0]
        out = jnp.zeros((in_dim, G), jnp.float32)
        for k in range(4):
            out = out.at[:, k * GS:k * GS + R].set(w_t[:, k * R:(k + 1) * R])
        return out

    # gate-aligned, transposed / fused weights (free host-side plumbing)
    w0 = gate_align(jnp.asarray(Wih[0]).T).astype(bf16)               # (D_in, G)
    whh0 = gate_align(jnp.asarray(Whh[0]).T).astype(bf16)             # (R, G)
    if T > 1:
        wf = jnp.stack(
            [gate_align(jnp.concatenate([Wih[l].T, Whh[l].T], axis=0))
             for l in range(1, T)], axis=0).astype(bf16)              # (T-1, 2R, G)
    else:
        wf = jnp.zeros((1, 2 * R, G), bf16)                           # unused dummy
    bias = jnp.stack(
        [gate_align((bih[l] + bhh[l]).reshape(1, 4 * R)) for l in range(T)],
        axis=0).astype(jnp.float32)                                   # (T, 1, G)

    # kb2d_pad[y, r*Ep + a] = kb[r, a, y]  (zeros in the padded lanes/rows)
    kbt = jnp.transpose(kb, (2, 0, 1))                                # (E, R, E)
    kb2d = jnp.zeros((Ep, R * Ep), jnp.float32)
    for r in range(R):
        kb2d = kb2d.at[:E, r * Ep:r * Ep + E].set(kbt[:, r, :])
    kb2d = kb2d.astype(bf16)

    # batch padding + lane-dense split of x (LSTM input | head | tail)
    xp = jnp.zeros((Bp, D_in), jnp.float32).at[:B].set(x).astype(bf16)
    head = jnp.zeros((Bp, Ep), jnp.float32).at[:B, :E].set(x[:, R:R + E])
    tail = jnp.zeros((Bp, Ep), jnp.float32).at[:B, :E].set(x[:, R + E:R + 2 * E])

    vmem = pl.BlockSpec(memory_space=pltpu.MemorySpace.VMEM)
    out = pl.pallas_call(
        _neural_lp_kernel,
        out_shape=jax.ShapeDtypeStruct((Bp, 128), jnp.float32),
        in_specs=[vmem] * 8,
        out_specs=vmem,
    )(xp, head, tail, w0, whh0, wf, bias, kb2d)
    return out[:B, :1]


def neural_lp_reference(x, kb, Wih, Whh, bih, bhh):
    """Plain-JAX, PyTorch-faithful reproduction of the forward pass.

    Uses the same bf16-operand / f32-accumulation matmul precision as the
    kernel so the comparison is tight.
    """
    B = x.shape[0]
    R, E, _ = kb.shape
    T = len(Wih)
    bf16 = jnp.bfloat16

    def mm(a, b):
        return jnp.dot(a.astype(bf16), b.astype(bf16),
                       preferred_element_type=jnp.float32)

    h = [jnp.zeros((B, R), jnp.float32) for _ in range(T)]
    c = [jnp.zeros((B, R), jnp.float32) for _ in range(T)]
    hs = []
    for t in range(T):
        inp = x
        for l in range(T):
            g = mm(inp, Wih[l].T) + mm(h[l], Whh[l].T) + bih[l] + bhh[l]
            i_g = jax.nn.sigmoid(g[:, :R])
            f_g = jax.nn.sigmoid(g[:, R:2 * R])
            g_g = jnp.tanh(g[:, 2 * R:3 * R])
            o_g = jax.nn.sigmoid(g[:, 3 * R:])
            c[l] = f_g * c[l] + i_g * g_g
            h[l] = o_g * jnp.tanh(c[l])
            inp = h[l]
        hs.append(h[T - 1])
    hs = [jax.nn.softmax(v, axis=-1) for v in hs]

    mem = [jnp.zeros((B, E), jnp.float32) for _ in range(T + 1)]
    mem[0] = x[:, R:R + E]
    # kb2d[y, r*E+a] = kb[r, a, y]  ->  sum_r w[b,r] * (pwm @ kb2d)[b, r*E:(r+1)*E]
    #   == einsum('br,rxy,by->bx', w, kb, pwm)   (the PyTorch temp_mat path)
    kb2d = jnp.transpose(kb, (2, 0, 1)).reshape(E, R * E)
    for i in range(T):
        w = jax.nn.softmax(hs[i], axis=-1)
        logits = jnp.stack([jnp.sum(hs[k] * hs[i], -1) for k in range(i + 1)], -1)
        att = jax.nn.softmax(logits, axis=-1)
        pwm = sum(att[:, k:k + 1] * mem[k] for k in range(i + 1))
        z = mm(pwm, kb2d)
        mem[i + 1] = sum(w[:, r:r + 1] * z[:, r * E:(r + 1) * E] for r in range(R))
    tail = x[:, R + E:R + 2 * E]
    return jnp.tanh(jnp.sum(mem[T] * tail, axis=-1, keepdims=True))


if __name__ == "__main__":
    # small shapes consistent with the module
    B, E, R, T = 2, 8, 4, 3          # batch, num_entity, num_relation, num_step
    D_in = R + 2 * E                 # LSTM input size
    H4 = 4 * R                       # 4 * hidden (hidden == num_relation)

    key = jax.random.PRNGKey(0)
    ks = jax.random.split(key, 2 + 4 * T)

    x = jax.random.normal(ks[0], (B, D_in), jnp.float32)
    kb = jax.random.uniform(ks[1], (R, E, E), jnp.float32)   # matrix_kb

    # deterministic LSTM parameters (torch-style U(-1/sqrt(H), 1/sqrt(H)), torch shapes)
    scale = 1.0 / np.sqrt(R)
    Wih, Whh, bih, bhh = [], [], [], []
    kidx = 2
    for l in range(T):
        in_dim = D_in if l == 0 else R
        Wih.append(jax.random.uniform(ks[kidx], (H4, in_dim), jnp.float32, -scale, scale)); kidx += 1
        Whh.append(jax.random.uniform(ks[kidx], (H4, R), jnp.float32, -scale, scale)); kidx += 1
        bih.append(jax.random.uniform(ks[kidx], (H4,), jnp.float32, -scale, scale)); kidx += 1
        bhh.append(jax.random.uniform(ks[kidx], (H4,), jnp.float32, -scale, scale)); kidx += 1

    out = jax.block_until_ready(neural_lp_forward(x, kb, Wih, Whh, bih, bhh))
    ref = jax.block_until_ready(neural_lp_reference(x, kb, Wih, Whh, bih, bhh))

    assert out.shape == (B, 1), out.shape
    assert np.all(np.isfinite(np.asarray(out)))
    assert np.allclose(np.asarray(out), np.asarray(ref), atol=5e-3, rtol=5e-3), (out, ref)
    print("KERNEL_OK")
</pallas_src>

<mosaic_0001>
module attributes {stable_mosaic.version = 11 : i64} {
  func.func @_neural_lp_kernel(%arg0: memref<8x20xbf16, #tpu.memory_space<vmem>>, %arg1: memref<8x128xf32, #tpu.memory_space<vmem>>, %arg2: memref<8x128xf32, #tpu.memory_space<vmem>>, %arg3: memref<20x512xbf16, #tpu.memory_space<vmem>>, %arg4: memref<4x512xbf16, #tpu.memory_space<vmem>>, %arg5: memref<2x8x512xbf16, #tpu.memory_space<vmem>>, %arg6: memref<3x1x512xf32, #tpu.memory_space<vmem>>, %arg7: memref<128x512xbf16, #tpu.memory_space<vmem>>, %arg8: memref<8x128xf32, #tpu.memory_space<vmem>>) attributes {dimension_semantics = [], scalar_prefetch = 0 : i64, scratch_operands = 0 : i64, tpu.core_type = #tpu.core_type<tc>} {
    %c0 = arith.constant 0 : index
    %c0_0 = arith.constant 0 : index
    %0 = vector.load %arg0[%c0, %c0_0] : memref<8x20xbf16, #tpu.memory_space<vmem>>, vector<8x20xbf16>
    %c0_1 = arith.constant 0 : index
    %c0_2 = arith.constant 0 : index
    %1 = vector.load %arg7[%c0_1, %c0_2] : memref<128x512xbf16, #tpu.memory_space<vmem>>, vector<128x512xbf16>
    %c0_3 = arith.constant 0 : index
    %c0_4 = arith.constant 0 : index
    %2 = vector.load %arg3[%c0_3, %c0_4] : memref<20x512xbf16, #tpu.memory_space<vmem>>, vector<20x512xbf16>
    %cst = arith.constant dense<0.000000e+00> : vector<8x512xf32>
    %3 = tpu.matmul %0, %2, %cst {dimension_numbers = #tpu.dot_dimension_numbers<[1], [0], [0], [1], [0, 0, 1, 1], [], []>} : vector<8x20xbf16>, vector<20x512xbf16>, vector<8x512xf32> -> vector<8x512xf32>
    %c0_5 = arith.constant 0 : index
    %c0_6 = arith.constant 0 : index
    %4 = vector.load %arg4[%c0_5, %c0_6] : memref<4x512xbf16, #tpu.memory_space<vmem>>, vector<4x512xbf16>
    %c0_7 = arith.constant 0 : index
    %c0_8 = arith.constant 0 : index
    %c0_9 = arith.constant 0 : index
    %5 = vector.load %arg5[%c0_7, %c0_8, %c0_9] : memref<2x8x512xbf16, #tpu.memory_space<vmem>>, vector<1x8x512xbf16>
    %6 = vector.shape_cast %5 : vector<1x8x512xbf16> to vector<8x512xbf16>
    %c1 = arith.constant 1 : index
    %c0_10 = arith.constant 0 : index
    %c0_11 = arith.constant 0 : index
    %7 = vector.load %arg5[%c1, %c0_10, %c0_11] : memref<2x8x512xbf16, #tpu.memory_space<vmem>>, vector<1x8x512xbf16>
    %8 = vector.shape_cast %7 : vector<1x8x512xbf16> to vector<8x512xbf16>
    %c0_12 = arith.constant 0 : index
    %c0_13 = arith.constant 0 : index
    %c0_14 = arith.constant 0 : index
    %9 = vector.load %arg6[%c0_12, %c0_13, %c0_14] : memref<3x1x512xf32, #tpu.memory_space<vmem>>, vector<1x1x512xf32>
    %10 = vector.shape_cast %9 : vector<1x1x512xf32> to vector<1x512xf32>
    %11 = vector.shape_cast %10 : vector<1x512xf32> to vector<1x512xf32>
    %12 = vector.broadcast %11 : vector<1x512xf32> to vector<8x512xf32>
    %c1_15 = arith.constant 1 : index
    %c0_16 = arith.constant 0 : index
    %c0_17 = arith.constant 0 : index
    %13 = vector.load %arg6[%c1_15, %c0_16, %c0_17] : memref<3x1x512xf32, #tpu.memory_space<vmem>>, vector<1x1x512xf32>
    %14 = vector.shape_cast %13 : vector<1x1x512xf32> to vector<1x512xf32>
    %15 = vector.shape_cast %14 : vector<1x512xf32> to vector<1x512xf32>
    %16 = vector.broadcast %15 : vector<1x512xf32> to vector<8x512xf32>
    %c2 = arith.constant 2 : index
    %c0_18 = arith.constant 0 : index
    %c0_19 = arith.constant 0 : index
    %17 = vector.load %arg6[%c2, %c0_18, %c0_19] : memref<3x1x512xf32, #tpu.memory_space<vmem>>, vector<1x1x512xf32>
    %18 = vector.shape_cast %17 : vector<1x1x512xf32> to vector<1x512xf32>
    %19 = vector.shape_cast %18 : vector<1x512xf32> to vector<1x512xf32>
    %20 = vector.broadcast %19 : vector<1x512xf32> to vector<8x512xf32>
    %cst_20 = arith.constant 0.000000e+00 : f32
    %21 = vector.broadcast %cst_20 : f32 to vector<8x4xf32>
    %cst_21 = arith.constant 0.000000e+00 : f32
    %22 = vector.broadcast %cst_21 : f32 to vector<8x4xf32>
    %cst_22 = arith.constant 0.000000e+00 : f32
    %23 = vector.broadcast %cst_22 : f32 to vector<8x4xf32>
    %cst_23 = arith.constant 0.000000e+00 : f32
    %24 = vector.broadcast %cst_23 : f32 to vector<8x4xf32>
    %cst_24 = arith.constant 0.000000e+00 : f32
    %25 = vector.broadcast %cst_24 : f32 to vector<8x4xf32>
    %cst_25 = arith.constant 0.000000e+00 : f32
    %26 = vector.broadcast %cst_25 : f32 to vector<8x4xf32>
    %27 = arith.truncf %21 : vector<8x4xf32> to vector<8x4xbf16>
    %cst_26 = arith.constant dense<0.000000e+00> : vector<8x512xf32>
    %28 = tpu.matmul %27, %4, %cst_26 {dimension_numbers = #tpu.dot_dimension_numbers<[1], [0], [0], [1], [0, 0, 1, 1], [], []>} : vector<8x4xbf16>, vector<4x512xbf16>, vector<8x512xf32> -> vector<8x512xf32>
    %29 = arith.addf %3, %28 : vector<8x512xf32>
    %30 = arith.addf %29, %12 : vector<8x512xf32>
    %31 = vector.extract_strided_slice %30 {offsets = [0, 0], sizes = [8, 4], strides = [1, 1]} : vector<8x512xf32> to vector<8x4xf32>
    %32 = arith.negf %31 : vector<8x4xf32>
    %33 = math.exp %32 : vector<8x4xf32>
    %cst_27 = arith.constant 1.000000e+00 : f32
    %34 = vector.broadcast %cst_27 : f32 to vector<8x4xf32>
    %35 = arith.addf %34, %33 : vector<8x4xf32>
    %36 = arith.divf %34, %35 : vector<8x4xf32>
    %37 = vector.extract_strided_slice %30 {offsets = [0, 128], sizes = [8, 4], strides = [1, 1]} : vector<8x512xf32> to vector<8x4xf32>
    %38 = arith.negf %37 : vector<8x4xf32>
    %39 = math.exp %38 : vector<8x4xf32>
    %cst_28 = arith.constant 1.000000e+00 : f32
    %40 = vector.broadcast %cst_28 : f32 to vector<8x4xf32>
    %41 = arith.addf %40, %39 : vector<8x4xf32>
    %42 = arith.divf %40, %41 : vector<8x4xf32>
    %43 = vector.extract_strided_slice %30 {offsets = [0, 256], sizes = [8, 4], strides = [1, 1]} : vector<8x512xf32> to vector<8x4xf32>
    %44 = math.tanh %43 : vector<8x4xf32>
    %45 = vector.extract_strided_slice %30 {offsets = [0, 384], sizes = [8, 4], strides = [1, 1]} : vector<8x512xf32> to vector<8x4xf32>
    %46 = arith.negf %45 : vector<8x4xf32>
    %47 = math.exp %46 : vector<8x4xf32>
    %cst_29 = arith.constant 1.000000e+00 : f32
    %48 = vector.broadcast %cst_29 : f32 to vector<8x4xf32>
    %49 = arith.addf %48, %47 : vector<8x4xf32>
    %50 = arith.divf %48, %49 : vector<8x4xf32>
    %51 = arith.mulf %42, %24 : vector<8x4xf32>
    %52 = arith.mulf %36, %44 : vector<8x4xf32>
    %53 = arith.addf %51, %52 : vector<8x4xf32>
    %54 = math.tanh %53 : vector<8x4xf32>
    %55 = arith.mulf %50, %54 : vector<8x4xf32>
    %56 = arith.truncf %55 : vector<8x4xf32> to vector<8x4xbf16>
    %57 = arith.truncf %22 : vector<8x4xf32> to vector<8x4xbf16>
    %58 = tpu.concatenate %56, %57 in 1 : vector<8x4xbf16>, vector<8x4xbf16> -> vector<8x8xbf16>
    %cst_30 = arith.constant dense<0.000000e+00> : vector<8x512xf32>
    %59 = tpu.matmul %58, %6, %cst_30 {dimension_numbers = #tpu.dot_dimension_numbers<[1], [0], [0], [1], [0, 0, 1, 1], [], []>} : vector<8x8xbf16>, vector<8x512xbf16>, vector<8x512xf32> -> vector<8x512xf32>
    %60 = arith.addf %59, %16 : vector<8x512xf32>
    %61 = vector.extract_strided_slice %60 {offsets = [0, 0], sizes = [8, 4], strides = [1, 1]} : vector<8x512xf32> to vector<8x4xf32>
    %62 = arith.negf %61 : vector<8x4xf32>
    %63 = math.exp %62 : vector<8x4xf32>
    %cst_31 = arith.constant 1.000000e+00 : f32
    %64 = vector.broadcast %cst_31 : f32 to vector<8x4xf32>
    %65 = arith.addf %64, %63 : vector<8x4xf32>
    %66 = arith.divf %64, %65 : vector<8x4xf32>
    %67 = vector.extract_strided_slice %60 {offsets = [0, 128], sizes = [8, 4], strides = [1, 1]} : vector<8x512xf32> to vector<8x4xf32>
    %68 = arith.negf %67 : vector<8x4xf32>
    %69 = math.exp %68 : vector<8x4xf32>
    %cst_32 = arith.constant 1.000000e+00 : f32
    %70 = vector.broadcast %cst_32 : f32 to vector<8x4xf32>
    %71 = arith.addf %70, %69 : vector<8x4xf32>
    %72 = arith.divf %70, %71 : vector<8x4xf32>
    %73 = vector.extract_strided_slice %60 {offsets = [0, 256], sizes = [8, 4], strides = [1, 1]} : vector<8x512xf32> to vector<8x4xf32>
    %74 = math.tanh %73 : vector<8x4xf32>
    %75 = vector.extract_strided_slice %60 {offsets = [0, 384], sizes = [8, 4], strides = [1, 1]} : vector<8x512xf32> to vector<8x4xf32>
    %76 = arith.negf %75 : vector<8x4xf32>
    %77 = math.exp %76 : vector<8x4xf32>
    %cst_33 = arith.constant 1.000000e+00 : f32
    %78 = vector.broadcast %cst_33 : f32 to vector<8x4xf32>
    %79 = arith.addf %78, %77 : vector<8x4xf32>
    %80 = arith.divf %78, %79 : vector<8x4xf32>
    %81 = arith.mulf %72, %25 : vector<8x4xf32>
    %82 = arith.mulf %66, %74 : vector<8x4xf32>
    %83 = arith.addf %81, %82 : vector<8x4xf32>
    %84 = math.tanh %83 : vector<8x4xf32>
    %85 = arith.mulf %80, %84 : vector<8x4xf32>
    %86 = arith.truncf %85 : vector<8x4xf32> to vector<8x4xbf16>
    %87 = arith.truncf %23 : vector<8x4xf32> to vector<8x4xbf16>
    %88 = tpu.concatenate %86, %87 in 1 : vector<8x4xbf16>, vector<8x4xbf16> -> vector<8x8xbf16>
    %cst_34 = arith.constant dense<0.000000e+00> : vector<8x512xf32>
    %89 = tpu.matmul %88, %8, %cst_34 {dimension_numbers = #tpu.dot_dimension_numbers<[1], [0], [0], [1], [0, 0, 1, 1], [], []>} : vector<8x8xbf16>, vector<8x512xbf16>, vector<8x512xf32> -> vector<8x512xf32>
    %90 = arith.addf %89, %20 : vector<8x512xf32>
    %91 = vector.extract_strided_slice %90 {offsets = [0, 0], sizes = [8, 4], strides = [1, 1]} : vector<8x512xf32> to vector<8x4xf32>
    %92 = arith.negf %91 : vector<8x4xf32>
    %93 = math.exp %92 : vector<8x4xf32>
    %cst_35 = arith.constant 1.000000e+00 : f32
    %94 = vector.broadcast %cst_35 : f32 to vector<8x4xf32>
    %95 = arith.addf %94, %93 : vector<8x4xf32>
    %96 = arith.divf %94, %95 : vector<8x4xf32>
    %97 = vector.extract_strided_slice %90 {offsets = [0, 128], sizes = [8, 4], strides = [1, 1]} : vector<8x512xf32> to vector<8x4xf32>
    %98 = arith.negf %97 : vector<8x4xf32>
    %99 = math.exp %98 : vector<8x4xf32>
    %cst_36 = arith.constant 1.000000e+00 : f32
    %100 = vector.broadcast %cst_36 : f32 to vector<8x4xf32>
    %101 = arith.addf %100, %99 : vector<8x4xf32>
    %102 = arith.divf %100, %101 : vector<8x4xf32>
    %103 = vector.extract_strided_slice %90 {offsets = [0, 256], sizes = [8, 4], strides = [1, 1]} : vector<8x512xf32> to vector<8x4xf32>
    %104 = math.tanh %103 : vector<8x4xf32>
    %105 = vector.extract_strided_slice %90 {offsets = [0, 384], sizes = [8, 4], strides = [1, 1]} : vector<8x512xf32> to vector<8x4xf32>
    %106 = arith.negf %105 : vector<8x4xf32>
    %107 = math.exp %106 : vector<8x4xf32>
    %cst_37 = arith.constant 1.000000e+00 : f32
    %108 = vector.broadcast %cst_37 : f32 to vector<8x4xf32>
    %109 = arith.addf %108, %107 : vector<8x4xf32>
    %110 = arith.divf %108, %109 : vector<8x4xf32>
    %111 = arith.mulf %102, %26 : vector<8x4xf32>
    %112 = arith.mulf %96, %104 : vector<8x4xf32>
    %113 = arith.addf %111, %112 : vector<8x4xf32>
    %114 = math.tanh %113 : vector<8x4xf32>
    %115 = arith.mulf %110, %114 : vector<8x4xf32>
    %cst_38 = arith.constant dense<0xFF800000> : vector<8xf32>
    %116 = vector.multi_reduction <maximumf>, %115, %cst_38 [1] : vector<8x4xf32> to vector<8xf32>
    %117 = vector.shape_cast %116 : vector<8xf32> to vector<8x1xf32>
    %118 = vector.broadcast %117 : vector<8x1xf32> to vector<8x4xf32>
    %119 = arith.subf %115, %118 : vector<8x4xf32>
    %120 = math.exp %119 : vector<8x4xf32>
    %cst_39 = arith.constant dense<0.000000e+00> : vector<8xf32>
    %121 = vector.multi_reduction <add>, %120, %cst_39 [1] : vector<8x4xf32> to vector<8xf32>
    %122 = vector.shape_cast %121 : vector<8xf32> to vector<8x1xf32>
    %123 = tpu.reciprocal %122 {approx = true} : vector<8x1xf32> -> vector<8x1xf32>
    %124 = vector.broadcast %123 : vector<8x1xf32> to vector<8x4xf32>
    %125 = arith.mulf %120, %124 : vector<8x4xf32>
    %126 = arith.truncf %55 : vector<8x4xf32> to vector<8x4xbf16>
    %cst_40 = arith.constant dense<0.000000e+00> : vector<8x512xf32>
    %127 = tpu.matmul %126, %4, %cst_40 {dimension_numbers = #tpu.dot_dimension_numbers<[1], [0], [0], [1], [0, 0, 1, 1], [], []>} : vector<8x4xbf16>, vector<4x512xbf16>, vector<8x512xf32> -> vector<8x512xf32>
    %128 = arith.addf %3, %127 : vector<8x512xf32>
    %129 = arith.addf %128, %12 : vector<8x512xf32>
    %130 = vector.extract_strided_slice %129 {offsets = [0, 0], sizes = [8, 4], strides = [1, 1]} : vector<8x512xf32> to vector<8x4xf32>
    %131 = arith.negf %130 : vector<8x4xf32>
    %132 = math.exp %131 : vector<8x4xf32>
    %cst_41 = arith.constant 1.000000e+00 : f32
    %133 = vector.broadcast %cst_41 : f32 to vector<8x4xf32>
    %134 = arith.addf %133, %132 : vector<8x4xf32>
    %135 = arith.divf %133, %134 : vector<8x4xf32>
    %136 = vector.extract_strided_slice %129 {offsets = [0, 128], sizes = [8, 4], strides = [1, 1]} : vector<8x512xf32> to vector<8x4xf32>
    %137 = arith.negf %136 : vector<8x4xf32>
    %138 = math.exp %137 : vector<8x4xf32>
    %cst_42 = arith.constant 1.000000e+00 : f32
    %139 = vector.broadcast %cst_42 : f32 to vector<8x4xf32>
    %140 = arith.addf %139, %138 : vector<8x4xf32>
    %141 = arith.divf %139, %140 : vector<8x4xf32>
    %142 = vector.extract_strided_slice %129 {offsets = [0, 256], sizes = [8, 4], strides = [1, 1]} : vector<8x512xf32> to vector<8x4xf32>
    %143 = math.tanh %142 : vector<8x4xf32>
    %144 = vector.extract_strided_slice %129 {offsets = [0, 384], sizes = [8, 4], strides = [1, 1]} : vector<8x512xf32> to vector<8x4xf32>
    %145 = arith.negf %144 : vector<8x4xf32>
    %146 = math.exp %145 : vector<8x4xf32>
    %cst_43 = arith.constant 1.000000e+00 : f32
    %147 = vector.broadcast %cst_43 : f32 to vector<8x4xf32>
    %148 = arith.addf %147, %146 : vector<8x4xf32>
    %149 = arith.divf %147, %148 : vector<8x4xf32>
    %150 = arith.mulf %141, %53 : vector<8x4xf32>
    %151 = arith.mulf %135, %143 : vector<8x4xf32>
    %152 = arith.addf %150, %151 : vector<8x4xf32>
    %153 = math.tanh %152 : vector<8x4xf32>
    %154 = arith.mulf %149, %153 : vector<8x4xf32>
    %155 = arith.truncf %154 : vector<8x4xf32> to vector<8x4xbf16>
    %156 = arith.truncf %85 : vector<8x4xf32> to vector<8x4xbf16>
    %157 = tpu.concatenate %155, %156 in 1 : vector<8x4xbf16>, vector<8x4xbf16> -> vector<8x8xbf16>
    %cst_44 = arith.constant dense<0.000000e+00> : vector<8x512xf32>
    %158 = tpu.matmul %157, %6, %cst_44 {dimension_numbers = #tpu.dot_dimension_numbers<[1], [0], [0], [1], [0, 0, 1, 1], [], []>} : vector<8x8xbf16>, vector<8x512xbf16>, vector<8x512xf32> -> vector<8x512xf32>
    %159 = arith.addf %158, %16 : vector<8x512xf32>
    %160 = vector.extract_strided_slice %159 {offsets = [0, 0], sizes = [8, 4], strides = [1, 1]} : vector<8x512xf32> to vector<8x4xf32>
    %161 = arith.negf %160 : vector<8x4xf32>
    %162 = math.exp %161 : vector<8x4xf32>
    %cst_45 = arith.constant 1.000000e+00 : f32
    %163 = vector.broadcast %cst_45 : f32 to vector<8x4xf32>
    %164 = arith.addf %163, %162 : vector<8x4xf32>
    %165 = arith.divf %163, %164 : vector<8x4xf32>
    %166 = vector.extract_strided_slice %159 {offsets = [0, 128], sizes = [8, 4], strides = [1, 1]} : vector<8x512xf32> to vector<8x4xf32>
    %167 = arith.negf %166 : vector<8x4xf32>
    %168 = math.exp %167 : vector<8x4xf32>
    %cst_46 = arith.constant 1.000000e+00 : f32
    %169 = vector.broadcast %cst_46 : f32 to vector<8x4xf32>
    %170 = arith.addf %169, %168 : vector<8x4xf32>
    %171 = arith.divf %169, %170 : vector<8x4xf32>
    %172 = vector.extract_strided_slice %159 {offsets = [0, 256], sizes = [8, 4], strides = [1, 1]} : vector<8x512xf32> to vector<8x4xf32>
    %173 = math.tanh %172 : vector<8x4xf32>
    %174 = vector.extract_strided_slice %159 {offsets = [0, 384], sizes = [8, 4], strides = [1, 1]} : vector<8x512xf32> to vector<8x4xf32>
    %175 = arith.negf %174 : vector<8x4xf32>
    %176 = math.exp %175 : vector<8x4xf32>
    %cst_47 = arith.constant 1.000000e+00 : f32
    %177 = vector.broadcast %cst_47 : f32 to vector<8x4xf32>
    %178 = arith.addf %177, %176 : vector<8x4xf32>
    %179 = arith.divf %177, %178 : vector<8x4xf32>
    %180 = arith.mulf %171, %83 : vector<8x4xf32>
    %181 = arith.mulf %165, %173 : vector<8x4xf32>
    %182 = arith.addf %180, %181 : vector<8x4xf32>
    %183 = math.tanh %182 : vector<8x4xf32>
    %184 = arith.mulf %179, %183 : vector<8x4xf32>
    %185 = arith.truncf %184 : vector<8x4xf32> to vector<8x4xbf16>
    %186 = arith.truncf %115 : vector<8x4xf32> to vector<8x4xbf16>
    %187 = tpu.concatenate %185, %186 in 1 : vector<8x4xbf16>, vector<8x4xbf16> -> vector<8x8xbf16>
    %cst_48 = arith.constant dense<0.000000e+00> : vector<8x512xf32>
    %188 = tpu.matmul %187, %8, %cst_48 {dimension_numbers = #tpu.dot_dimension_numbers<[1], [0], [0], [1], [0, 0, 1, 1], [], []>} : vector<8x8xbf16>, vector<8x512xbf16>, vector<8x512xf32> -> vector<8x512xf32>
    %189 = arith.addf %188, %20 : vector<8x512xf32>
    %190 = vector.extract_strided_slice %189 {offsets = [0, 0], sizes = [8, 4], strides = [1, 1]} : vector<8x512xf32> to vector<8x4xf32>
    %191 = arith.negf %190 : vector<8x4xf32>
    %192 = math.exp %191 : vector<8x4xf32>
    %cst_49 = arith.constant 1.000000e+00 : f32
    %193 = vector.broadcast %cst_49 : f32 to vector<8x4xf32>
    %194 = arith.addf %193, %192 : vector<8x4xf32>
    %195 = arith.divf %193, %194 : vector<8x4xf32>
    %196 = vector.extract_strided_slice %189 {offsets = [0, 128], sizes = [8, 4], strides = [1, 1]} : vector<8x512xf32> to vector<8x4xf32>
    %197 = arith.negf %196 : vector<8x4xf32>
    %198 = math.exp %197 : vector<8x4xf32>
    %cst_50 = arith.constant 1.000000e+00 : f32
    %199 = vector.broadcast %cst_50 : f32 to vector<8x4xf32>
    %200 = arith.addf %199, %198 : vector<8x4xf32>
    %201 = arith.divf %199, %200 : vector<8x4xf32>
    %202 = vector.extract_strided_slice %189 {offsets = [0, 256], sizes = [8, 4], strides = [1, 1]} : vector<8x512xf32> to vector<8x4xf32>
    %203 = math.tanh %202 : vector<8x4xf32>
    %204 = vector.extract_strided_slice %189 {offsets = [0, 384], sizes = [8, 4], strides = [1, 1]} : vector<8x512xf32> to vector<8x4xf32>
    %205 = arith.negf %204 : vector<8x4xf32>
    %206 = math.exp %205 : vector<8x4xf32>
    %cst_51 = arith.constant 1.000000e+00 : f32
    %207 = vector.broadcast %cst_51 : f32 to vector<8x4xf32>
    %208 = arith.addf %207, %206 : vector<8x4xf32>
    %209 = arith.divf %207, %208 : vector<8x4xf32>
    %210 = arith.mulf %201, %113 : vector<8x4xf32>
    %211 = arith.mulf %195, %203 : vector<8x4xf32>
    %212 = arith.addf %210, %211 : vector<8x4xf32>
    %213 = math.tanh %212 : vector<8x4xf32>
    %214 = arith.mulf %209, %213 : vector<8x4xf32>
    %cst_52 = arith.constant dense<0xFF800000> : vector<8xf32>
    %215 = vector.multi_reduction <maximumf>, %214, %cst_52 [1] : vector<8x4xf32> to vector<8xf32>
    %216 = vector.shape_cast %215 : vector<8xf32> to vector<8x1xf32>
    %217 = vector.broadcast %216 : vector<8x1xf32> to vector<8x4xf32>
    %218 = arith.subf %214, %217 : vector<8x4xf32>
    %219 = math.exp %218 : vector<8x4xf32>
    %cst_53 = arith.constant dense<0.000000e+00> : vector<8xf32>
    %220 = vector.multi_reduction <add>, %219, %cst_53 [1] : vector<8x4xf32> to vector<8xf32>
    %221 = vector.shape_cast %220 : vector<8xf32> to vector<8x1xf32>
    %222 = tpu.reciprocal %221 {approx = true} : vector<8x1xf32> -> vector<8x1xf32>
    %223 = vector.broadcast %222 : vector<8x1xf32> to vector<8x4xf32>
    %224 = arith.mulf %219, %223 : vector<8x4xf32>
    %225 = arith.truncf %154 : vector<8x4xf32> to vector<8x4xbf16>
    %cst_54 = arith.constant dense<0.000000e+00> : vector<8x512xf32>
    %226 = tpu.matmul %225, %4, %cst_54 {dimension_numbers = #tpu.dot_dimension_numbers<[1], [0], [0], [1], [0, 0, 1, 1], [], []>} : vector<8x4xbf16>, vector<4x512xbf16>, vector<8x512xf32> -> vector<8x512xf32>
    %227 = arith.addf %3, %226 : vector<8x512xf32>
    %228 = arith.addf %227, %12 : vector<8x512xf32>
    %229 = vector.extract_strided_slice %228 {offsets = [0, 0], sizes = [8, 4], strides = [1, 1]} : vector<8x512xf32> to vector<8x4xf32>
    %230 = arith.negf %229 : vector<8x4xf32>
    %231 = math.exp %230 : vector<8x4xf32>
    %cst_55 = arith.constant 1.000000e+00 : f32
    %232 = vector.broadcast %cst_55 : f32 to vector<8x4xf32>
    %233 = arith.addf %232, %231 : vector<8x4xf32>
    %234 = arith.divf %232, %233 : vector<8x4xf32>
    %235 = vector.extract_strided_slice %228 {offsets = [0, 128], sizes = [8, 4], strides = [1, 1]} : vector<8x512xf32> to vector<8x4xf32>
    %236 = arith.negf %235 : vector<8x4xf32>
    %237 = math.exp %236 : vector<8x4xf32>
    %cst_56 = arith.constant 1.000000e+00 : f32
    %238 = vector.broadcast %cst_56 : f32 to vector<8x4xf32>
    %239 = arith.addf %238, %237 : vector<8x4xf32>
    %240 = arith.divf %238, %239 : vector<8x4xf32>
    %241 = vector.extract_strided_slice %228 {offsets = [0, 256], sizes = [8, 4], strides = [1, 1]} : vector<8x512xf32> to vector<8x4xf32>
    %242 = math.tanh %241 : vector<8x4xf32>
    %243 = vector.extract_strided_slice %228 {offsets = [0, 384], sizes = [8, 4], strides = [1, 1]} : vector<8x512xf32> to vector<8x4xf32>
    %244 = arith.negf %243 : vector<8x4xf32>
    %245 = math.exp %244 : vector<8x4xf32>
    %cst_57 = arith.constant 1.000000e+00 : f32
    %246 = vector.broadcast %cst_57 : f32 to vector<8x4xf32>
    %247 = arith.addf %246, %245 : vector<8x4xf32>
    %248 = arith.divf %246, %247 : vector<8x4xf32>
    %249 = arith.mulf %240, %152 : vector<8x4xf32>
    %250 = arith.mulf %234, %242 : vector<8x4xf32>
    %251 = arith.addf %249, %250 : vector<8x4xf32>
    %252 = math.tanh %251 : vector<8x4xf32>
    %253 = arith.mulf %248, %252 : vector<8x4xf32>
    %254 = arith.truncf %253 : vector<8x4xf32> to vector<8x4xbf16>
    %255 = arith.truncf %184 : vector<8x4xf32> to vector<8x4xbf16>
    %256 = tpu.concatenate %254, %255 in 1 : vector<8x4xbf16>, vector<8x4xbf16> -> vector<8x8xbf16>
    %cst_58 = arith.constant dense<0.000000e+00> : vector<8x512xf32>
    %257 = tpu.matmul %256, %6, %cst_58 {dimension_numbers = #tpu.dot_dimension_numbers<[1], [0], [0], [1], [0, 0, 1, 1], [], []>} : vector<8x8xbf16>, vector<8x512xbf16>, vector<8x512xf32> -> vector<8x512xf32>
    %258 = arith.addf %257, %16 : vector<8x512xf32>
    %259 = vector.extract_strided_slice %258 {offsets = [0, 0], sizes = [8, 4], strides = [1, 1]} : vector<8x512xf32> to vector<8x4xf32>
    %260 = arith.negf %259 : vector<8x4xf32>
    %261 = math.exp %260 : vector<8x4xf32>
    %cst_59 = arith.constant 1.000000e+00 : f32
    %262 = vector.broadcast %cst_59 : f32 to vector<8x4xf32>
    %263 = arith.addf %262, %261 : vector<8x4xf32>
    %264 = arith.divf %262, %263 : vector<8x4xf32>
    %265 = vector.extract_strided_slice %258 {offsets = [0, 128], sizes = [8, 4], strides = [1, 1]} : vector<8x512xf32> to vector<8x4xf32>
    %266 = arith.negf %265 : vector<8x4xf32>
    %267 = math.exp %266 : vector<8x4xf32>
    %cst_60 = arith.constant 1.000000e+00 : f32
    %268 = vector.broadcast %cst_60 : f32 to vector<8x4xf32>
    %269 = arith.addf %268, %267 : vector<8x4xf32>
    %270 = arith.divf %268, %269 : vector<8x4xf32>
    %271 = vector.extract_strided_slice %258 {offsets = [0, 256], sizes = [8, 4], strides = [1, 1]} : vector<8x512xf32> to vector<8x4xf32>
    %272 = math.tanh %271 : vector<8x4xf32>
    %273 = vector.extract_strided_slice %258 {offsets = [0, 384], sizes = [8, 4], strides = [1, 1]} : vector<8x512xf32> to vector<8x4xf32>
    %274 = arith.negf %273 : vector<8x4xf32>
    %275 = math.exp %274 : vector<8x4xf32>
    %cst_61 = arith.constant 1.000000e+00 : f32
    %276 = vector.broadcast %cst_61 : f32 to vector<8x4xf32>
    %277 = arith.addf %276, %275 : vector<8x4xf32>
    %278 = arith.divf %276, %277 : vector<8x4xf32>
    %279 = arith.mulf %270, %182 : vector<8x4xf32>
    %280 = arith.mulf %264, %272 : vector<8x4xf32>
    %281 = arith.addf %279, %280 : vector<8x4xf32>
    %282 = math.tanh %281 : vector<8x4xf32>
    %283 = arith.mulf %278, %282 : vector<8x4xf32>
    %284 = arith.truncf %283 : vector<8x4xf32> to vector<8x4xbf16>
    %285 = arith.truncf %214 : vector<8x4xf32> to vector<8x4xbf16>
    %286 = tpu.concatenate %284, %285 in 1 : vector<8x4xbf16>, vector<8x4xbf16> -> vector<8x8xbf16>
    %cst_62 = arith.constant dense<0.000000e+00> : vector<8x512xf32>
    %287 = tpu.matmul %286, %8, %cst_62 {dimension_numbers = #tpu.dot_dimension_numbers<[1], [0], [0], [1], [0, 0, 1, 1], [], []>} : vector<8x8xbf16>, vector<8x512xbf16>, vector<8x512xf32> -> vector<8x512xf32>
    %288 = arith.addf %287, %20 : vector<8x512xf32>
    %289 = vector.extract_strided_slice %288 {offsets = [0, 0], sizes = [8, 4], strides = [1, 1]} : vector<8x512xf32> to vector<8x4xf32>
    %290 = arith.negf %289 : vector<8x4xf32>
    %291 = math.exp %290 : vector<8x4xf32>
    %cst_63 = arith.constant 1.000000e+00 : f32
    %292 = vector.broadcast %cst_63 : f32 to vector<8x4xf32>
    %293 = arith.addf %292, %291 : vector<8x4xf32>
    %294 = arith.divf %292, %293 : vector<8x4xf32>
    %295 = vector.extract_strided_slice %288 {offsets = [0, 128], sizes = [8, 4], strides = [1, 1]} : vector<8x512xf32> to vector<8x4xf32>
    %296 = arith.negf %295 : vector<8x4xf32>
    %297 = math.exp %296 : vector<8x4xf32>
    %cst_64 = arith.constant 1.000000e+00 : f32
    %298 = vector.broadcast %cst_64 : f32 to vector<8x4xf32>
    %299 = arith.addf %298, %297 : vector<8x4xf32>
    %300 = arith.divf %298, %299 : vector<8x4xf32>
    %301 = vector.extract_strided_slice %288 {offsets = [0, 256], sizes = [8, 4], strides = [1, 1]} : vector<8x512xf32> to vector<8x4xf32>
    %302 = math.tanh %301 : vector<8x4xf32>
    %303 = vector.extract_strided_slice %288 {offsets = [0, 384], sizes = [8, 4], strides = [1, 1]} : vector<8x512xf32> to vector<8x4xf32>
    %304 = arith.negf %303 : vector<8x4xf32>
    %305 = math.exp %304 : vector<8x4xf32>
    %cst_65 = arith.constant 1.000000e+00 : f32
    %306 = vector.broadcast %cst_65 : f32 to vector<8x4xf32>
    %307 = arith.addf %306, %305 : vector<8x4xf32>
    %308 = arith.divf %306, %307 : vector<8x4xf32>
    %309 = arith.mulf %300, %212 : vector<8x4xf32>
    %310 = arith.mulf %294, %302 : vector<8x4xf32>
    %311 = arith.addf %309, %310 : vector<8x4xf32>
    %312 = math.tanh %311 : vector<8x4xf32>
    %313 = arith.mulf %308, %312 : vector<8x4xf32>
    %cst_66 = arith.constant dense<0xFF800000> : vector<8xf32>
    %314 = vector.multi_reduction <maximumf>, %313, %cst_66 [1] : vector<8x4xf32> to vector<8xf32>
    %315 = vector.shape_cast %314 : vector<8xf32> to vector<8x1xf32>
    %316 = vector.broadcast %315 : vector<8x1xf32> to vector<8x4xf32>
    %317 = arith.subf %313, %316 : vector<8x4xf32>
    %318 = math.exp %317 : vector<8x4xf32>
    %cst_67 = arith.constant dense<0.000000e+00> : vector<8xf32>
    %319 = vector.multi_reduction <add>, %318, %cst_67 [1] : vector<8x4xf32> to vector<8xf32>
    %320 = vector.shape_cast %319 : vector<8xf32> to vector<8x1xf32>
    %321 = tpu.reciprocal %320 {approx = true} : vector<8x1xf32> -> vector<8x1xf32>
    %322 = vector.broadcast %321 : vector<8x1xf32> to vector<8x4xf32>
    %323 = arith.mulf %318, %322 : vector<8x4xf32>
    %c0_68 = arith.constant 0 : index
    %c0_69 = arith.constant 0 : index
    %324 = vector.load %arg1[%c0_68, %c0_69] : memref<8x128xf32, #tpu.memory_space<vmem>>, vector<8x128xf32>
    %cst_70 = arith.constant dense<0xFF800000> : vector<8xf32>
    %325 = vector.multi_reduction <maximumf>, %125, %cst_70 [1] : vector<8x4xf32> to vector<8xf32>
    %326 = vector.shape_cast %325 : vector<8xf32> to vector<8x1xf32>
    %327 = vector.broadcast %326 : vector<8x1xf32> to vector<8x4xf32>
    %328 = arith.subf %125, %327 : vector<8x4xf32>
    %329 = math.exp %328 : vector<8x4xf32>
    %cst_71 = arith.constant dense<0.000000e+00> : vector<8xf32>
    %330 = vector.multi_reduction <add>, %329, %cst_71 [1] : vector<8x4xf32> to vector<8xf32>
    %331 = vector.shape_cast %330 : vector<8xf32> to vector<8x1xf32>
    %332 = tpu.reciprocal %331 {approx = true} : vector<8x1xf32> -> vector<8x1xf32>
    %333 = vector.broadcast %332 : vector<8x1xf32> to vector<8x4xf32>
    %334 = arith.mulf %329, %333 : vector<8x4xf32>
    %335 = arith.mulf %125, %125 : vector<8x4xf32>
    %cst_72 = arith.constant dense<0.000000e+00> : vector<8xf32>
    %336 = vector.multi_reduction <add>, %335, %cst_72 [1] : vector<8x4xf32> to vector<8xf32>
    %337 = vector.shape_cast %336 : vector<8xf32> to vector<8x1xf32>
    %338 = arith.subf %337, %337 : vector<8x1xf32>
    %339 = math.exp %338 : vector<8x1xf32>
    %340 = tpu.reciprocal %339 {approx = true} : vector<8x1xf32> -> vector<8x1xf32>
    %341 = arith.mulf %339, %340 : vector<8x1xf32>
    %342 = vector.broadcast %341 : vector<8x1xf32> to vector<8x128xf32>
    %343 = arith.mulf %342, %324 : vector<8x128xf32>
    %344 = arith.truncf %343 : vector<8x128xf32> to vector<8x128xbf16>
    %cst_73 = arith.constant dense<0.000000e+00> : vector<8x512xf32>
    %345 = tpu.matmul %344, %1, %cst_73 {dimension_numbers = #tpu.dot_dimension_numbers<[1], [0], [0], [1], [0, 0, 1, 1], [], []>} : vector<8x128xbf16>, vector<128x512xbf16>, vector<8x512xf32> -> vector<8x512xf32>
    %346 = vector.extract_strided_slice %334 {offsets = [0, 0], sizes = [8, 1], strides = [1, 1]} : vector<8x4xf32> to vector<8x1xf32>
    %347 = vector.extract_strided_slice %345 {offsets = [0, 0], sizes = [8, 128], strides = [1, 1]} : vector<8x512xf32> to vector<8x128xf32>
    %348 = vector.broadcast %346 : vector<8x1xf32> to vector<8x128xf32>
    %349 = arith.mulf %348, %347 : vector<8x128xf32>
    %350 = vector.extract_strided_slice %334 {offsets = [0, 1], sizes = [8, 1], strides = [1, 1]} : vector<8x4xf32> to vector<8x1xf32>
    %351 = vector.extract_strided_slice %345 {offsets = [0, 128], sizes = [8, 128], strides = [1, 1]} : vector<8x512xf32> to vector<8x128xf32>
    %352 = vector.broadcast %350 : vector<8x1xf32> to vector<8x128xf32>
    %353 = arith.mulf %352, %351 : vector<8x128xf32>
    %354 = arith.addf %349, %353 : vector<8x128xf32>
    %355 = vector.extract_strided_slice %334 {offsets = [0, 2], sizes = [8, 1], strides = [1, 1]} : vector<8x4xf32> to vector<8x1xf32>
    %356 = vector.extract_strided_slice %345 {offsets = [0, 256], sizes = [8, 128], strides = [1, 1]} : vector<8x512xf32> to vector<8x128xf32>
    %357 = vector.broadcast %355 : vector<8x1xf32> to vector<8x128xf32>
    %358 = arith.mulf %357, %356 : vector<8x128xf32>
    %359 = arith.addf %354, %358 : vector<8x128xf32>
    %360 = vector.extract_strided_slice %334 {offsets = [0, 3], sizes = [8, 1], strides = [1, 1]} : vector<8x4xf32> to vector<8x1xf32>
    %361 = vector.extract_strided_slice %345 {offsets = [0, 384], sizes = [8, 128], strides = [1, 1]} : vector<8x512xf32> to vector<8x128xf32>
    %362 = vector.broadcast %360 : vector<8x1xf32> to vector<8x128xf32>
    %363 = arith.mulf %362, %361 : vector<8x128xf32>
    %364 = arith.addf %359, %363 : vector<8x128xf32>
    %cst_74 = arith.constant dense<0xFF800000> : vector<8xf32>
    %365 = vector.multi_reduction <maximumf>, %224, %cst_74 [1] : vector<8x4xf32> to vector<8xf32>
    %366 = vector.shape_cast %365 : vector<8xf32> to vector<8x1xf32>
    %367 = vector.broadcast %366 : vector<8x1xf32> to vector<8x4xf32>
    %368 = arith.subf %224, %367 : vector<8x4xf32>
    %369 = math.exp %368 : vector<8x4xf32>
    %cst_75 = arith.constant dense<0.000000e+00> : vector<8xf32>
    %370 = vector.multi_reduction <add>, %369, %cst_75 [1] : vector<8x4xf32> to vector<8xf32>
    %371 = vector.shape_cast %370 : vector<8xf32> to vector<8x1xf32>
    %372 = tpu.reciprocal %371 {approx = true} : vector<8x1xf32> -> vector<8x1xf32>
    %373 = vector.broadcast %372 : vector<8x1xf32> to vector<8x4xf32>
    %374 = arith.mulf %369, %373 : vector<8x4xf32>
    %375 = arith.mulf %125, %224 : vector<8x4xf32>
    %cst_76 = arith.constant dense<0.000000e+00> : vector<8xf32>
    %376 = vector.multi_reduction <add>, %375, %cst_76 [1] : vector<8x4xf32> to vector<8xf32>
    %377 = vector.shape_cast %376 : vector<8xf32> to vector<8x1xf32>
    %378 = arith.mulf %224, %224 : vector<8x4xf32>
    %cst_77 = arith.constant dense<0.000000e+00> : vector<8xf32>
    %379 = vector.multi_reduction <add>, %378, %cst_77 [1] : vector<8x4xf32> to vector<8xf32>
    %380 = vector.shape_cast %379 : vector<8xf32> to vector<8x1xf32>
    %381 = arith.maximumf %377, %380 : vector<8x1xf32>
    %382 = arith.subf %377, %381 : vector<8x1xf32>
    %383 = math.exp %382 : vector<8x1xf32>
    %384 = arith.subf %380, %381 : vector<8x1xf32>
    %385 = math.exp %384 : vector<8x1xf32>
    %386 = arith.addf %383, %385 : vector<8x1xf32>
    %387 = tpu.reciprocal %386 {approx = true} : vector<8x1xf32> -> vector<8x1xf32>
    %388 = arith.mulf %383, %387 : vector<8x1xf32>
    %389 = vector.broadcast %388 : vector<8x1xf32> to vector<8x128xf32>
    %390 = arith.mulf %389, %324 : vector<8x128xf32>
    %391 = arith.mulf %385, %387 : vector<8x1xf32>
    %392 = vector.broadcast %391 : vector<8x1xf32> to vector<8x128xf32>
    %393 = arith.mulf %392, %364 : vector<8x128xf32>
    %394 = arith.addf %390, %393 : vector<8x128xf32>
    %395 = arith.truncf %394 : vector<8x128xf32> to vector<8x128xbf16>
    %cst_78 = arith.constant dense<0.000000e+00> : vector<8x512xf32>
    %396 = tpu.matmul %395, %1, %cst_78 {dimension_numbers = #tpu.dot_dimension_numbers<[1], [0], [0], [1], [0, 0, 1, 1], [], []>} : vector<8x128xbf16>, vector<128x512xbf16>, vector<8x512xf32> -> vector<8x512xf32>
    %397 = vector.extract_strided_slice %374 {offsets = [0, 0], sizes = [8, 1], strides = [1, 1]} : vector<8x4xf32> to vector<8x1xf32>
    %398 = vector.extract_strided_slice %396 {offsets = [0, 0], sizes = [8, 128], strides = [1, 1]} : vector<8x512xf32> to vector<8x128xf32>
    %399 = vector.broadcast %397 : vector<8x1xf32> to vector<8x128xf32>
    %400 = arith.mulf %399, %398 : vector<8x128xf32>
    %401 = vector.extract_strided_slice %374 {offsets = [0, 1], sizes = [8, 1], strides = [1, 1]} : vector<8x4xf32> to vector<8x1xf32>
    %402 = vector.extract_strided_slice %396 {offsets = [0, 128], sizes = [8, 128], strides = [1, 1]} : vector<8x512xf32> to vector<8x128xf32>
    %403 = vector.broadcast %401 : vector<8x1xf32> to vector<8x128xf32>
    %404 = arith.mulf %403, %402 : vector<8x128xf32>
    %405 = arith.addf %400, %404 : vector<8x128xf32>
    %406 = vector.extract_strided_slice %374 {offsets = [0, 2], sizes = [8, 1], strides = [1, 1]} : vector<8x4xf32> to vector<8x1xf32>
    %407 = vector.extract_strided_slice %396 {offsets = [0, 256], sizes = [8, 128], strides = [1, 1]} : vector<8x512xf32> to vector<8x128xf32>
    %408 = vector.broadcast %406 : vector<8x1xf32> to vector<8x128xf32>
    %409 = arith.mulf %408, %407 : vector<8x128xf32>
    %410 = arith.addf %405, %409 : vector<8x128xf32>
    %411 = vector.extract_strided_slice %374 {offsets = [0, 3], sizes = [8, 1], strides = [1, 1]} : vector<8x4xf32> to vector<8x1xf32>
    %412 = vector.extract_strided_slice %396 {offsets = [0, 384], sizes = [8, 128], strides = [1, 1]} : vector<8x512xf32> to vector<8x128xf32>
    %413 = vector.broadcast %411 : vector<8x1xf32> to vector<8x128xf32>
    %414 = arith.mulf %413, %412 : vector<8x128xf32>
    %415 = arith.addf %410, %414 : vector<8x128xf32>
    %cst_79 = arith.constant dense<0xFF800000> : vector<8xf32>
    %416 = vector.multi_reduction <maximumf>, %323, %cst_79 [1] : vector<8x4xf32> to vector<8xf32>
    %417 = vector.shape_cast %416 : vector<8xf32> to vector<8x1xf32>
    %418 = vector.broadcast %417 : vector<8x1xf32> to vector<8x4xf32>
    %419 = arith.subf %323, %418 : vector<8x4xf32>
    %420 = math.exp %419 : vector<8x4xf32>
    %cst_80 = arith.constant dense<0.000000e+00> : vector<8xf32>
    %421 = vector.multi_reduction <add>, %420, %cst_80 [1] : vector<8x4xf32> to vector<8xf32>
    %422 = vector.shape_cast %421 : vector<8xf32> to vector<8x1xf32>
    %423 = tpu.reciprocal %422 {approx = true} : vector<8x1xf32> -> vector<8x1xf32>
    %424 = vector.broadcast %423 : vector<8x1xf32> to vector<8x4xf32>
    %425 = arith.mulf %420, %424 : vector<8x4xf32>
    %426 = arith.mulf %125, %323 : vector<8x4xf32>
    %cst_81 = arith.constant dense<0.000000e+00> : vector<8xf32>
    %427 = vector.multi_reduction <add>, %426, %cst_81 [1] : vector<8x4xf32> to vector<8xf32>
    %428 = vector.shape_cast %427 : vector<8xf32> to vector<8x1xf32>
    %429 = arith.mulf %224, %323 : vector<8x4xf32>
    %cst_82 = arith.constant dense<0.000000e+00> : vector<8xf32>
    %430 = vector.multi_reduction <add>, %429, %cst_82 [1] : vector<8x4xf32> to vector<8xf32>
    %431 = vector.shape_cast %430 : vector<8xf32> to vector<8x1xf32>
    %432 = arith.mulf %323, %323 : vector<8x4xf32>
    %cst_83 = arith.constant dense<0.000000e+00> : vector<8xf32>
    %433 = vector.multi_reduction <add>, %432, %cst_83 [1] : vector<8x4xf32> to vector<8xf32>
    %434 = vector.shape_cast %433 : vector<8xf32> to vector<8x1xf32>
    %435 = arith.maximumf %428, %431 : vector<8x1xf32>
    %436 = arith.maximumf %435, %434 : vector<8x1xf32>
    %437 = arith.subf %428, %436 : vector<8x1xf32>
    %438 = math.exp %437 : vector<8x1xf32>
    %439 = arith.subf %431, %436 : vector<8x1xf32>
    %440 = math.exp %439 : vector<8x1xf32>
    %441 = arith.subf %434, %436 : vector<8x1xf32>
    %442 = math.exp %441 : vector<8x1xf32>
    %443 = arith.addf %438, %440 : vector<8x1xf32>
    %444 = arith.addf %443, %442 : vector<8x1xf32>
    %445 = tpu.reciprocal %444 {approx = true} : vector<8x1xf32> -> vector<8x1xf32>
    %446 = arith.mulf %438, %445 : vector<8x1xf32>
    %447 = vector.broadcast %446 : vector<8x1xf32> to vector<8x128xf32>
    %448 = arith.mulf %447, %324 : vector<8x128xf32>
    %449 = arith.mulf %440, %445 : vector<8x1xf32>
    %450 = vector.broadcast %449 : vector<8x1xf32> to vector<8x128xf32>
    %451 = arith.mulf %450, %364 : vector<8x128xf32>
    %452 = arith.addf %448, %451 : vector<8x128xf32>
    %453 = arith.mulf %442, %445 : vector<8x1xf32>
    %454 = vector.broadcast %453 : vector<8x1xf32> to vector<8x128xf32>
    %455 = arith.mulf %454, %415 : vector<8x128xf32>
    %456 = arith.addf %452, %455 : vector<8x128xf32>
    %457 = arith.truncf %456 : vector<8x128xf32> to vector<8x128xbf16>
    %cst_84 = arith.constant dense<0.000000e+00> : vector<8x512xf32>
    %458 = tpu.matmul %457, %1, %cst_84 {dimension_numbers = #tpu.dot_dimension_numbers<[1], [0], [0], [1], [0, 0, 1, 1], [], []>} : vector<8x128xbf16>, vector<128x512xbf16>, vector<8x512xf32> -> vector<8x512xf32>
    %459 = vector.extract_strided_slice %425 {offsets = [0, 0], sizes = [8, 1], strides = [1, 1]} : vector<8x4xf32> to vector<8x1xf32>
    %460 = vector.extract_strided_slice %458 {offsets = [0, 0], sizes = [8, 128], strides = [1, 1]} : vector<8x512xf32> to vector<8x128xf32>
    %461 = vector.broadcast %459 : vector<8x1xf32> to vector<8x128xf32>
    %462 = arith.mulf %461, %460 : vector<8x128xf32>
    %463 = vector.extract_strided_slice %425 {offsets = [0, 1], sizes = [8, 1], strides = [1, 1]} : vector<8x4xf32> to vector<8x1xf32>
    %464 = vector.extract_strided_slice %458 {offsets = [0, 128], sizes = [8, 128], strides = [1, 1]} : vector<8x512xf32> to vector<8x128xf32>
    %465 = vector.broadcast %463 : vector<8x1xf32> to vector<8x128xf32>
    %466 = arith.mulf %465, %464 : vector<8x128xf32>
    %467 = arith.addf %462, %466 : vector<8x128xf32>
    %468 = vector.extract_strided_slice %425 {offsets = [0, 2], sizes = [8, 1], strides = [1, 1]} : vector<8x4xf32> to vector<8x1xf32>
    %469 = vector.extract_strided_slice %458 {offsets = [0, 256], sizes = [8, 128], strides = [1, 1]} : vector<8x512xf32> to vector<8x128xf32>
    %470 = vector.broadcast %468 : vector<8x1xf32> to vector<8x128xf32>
    %471 = arith.mulf %470, %469 : vector<8x128xf32>
    %472 = arith.addf %467, %471 : vector<8x128xf32>
    %473 = vector.extract_strided_slice %425 {offsets = [0, 3], sizes = [8, 1], strides = [1, 1]} : vector<8x4xf32> to vector<8x1xf32>
    %474 = vector.extract_strided_slice %458 {offsets = [0, 384], sizes = [8, 128], strides = [1, 1]} : vector<8x512xf32> to vector<8x128xf32>
    %475 = vector.broadcast %473 : vector<8x1xf32> to vector<8x128xf32>
    %476 = arith.mulf %475, %474 : vector<8x128xf32>
    %477 = arith.addf %472, %476 : vector<8x128xf32>
    %c0_85 = arith.constant 0 : index
    %c0_86 = arith.constant 0 : index
    %478 = vector.load %arg2[%c0_85, %c0_86] : memref<8x128xf32, #tpu.memory_space<vmem>>, vector<8x128xf32>
    %479 = arith.mulf %477, %478 : vector<8x128xf32>
    %cst_87 = arith.constant dense<0.000000e+00> : vector<8xf32>
    %480 = vector.multi_reduction <add>, %479, %cst_87 [1] : vector<8x128xf32> to vector<8xf32>
    %481 = vector.shape_cast %480 : vector<8xf32> to vector<8x1xf32>
    %482 = math.tanh %481 : vector<8x1xf32>
    %483 = vector.shape_cast %482 : vector<8x1xf32> to vector<8x1xf32>
    %484 = vector.broadcast %483 : vector<8x1xf32> to vector<8x128xf32>
    %c0_88 = arith.constant 0 : index
    %c0_89 = arith.constant 0 : index
    %485 = vector.load %arg8[%c0_88, %c0_89] : memref<8x128xf32, #tpu.memory_space<vmem>>, vector<8x128xf32>
    tpu.vector_store %arg8[%c0_88, %c0_89], %484 {strides = array<i32>} : memref<8x128xf32, #tpu.memory_space<vmem>>, vector<8x128xf32>,
    return
  }
}

</mosaic_0001>

<llo_original>
// kernel: tpu_custom_call.1
$region0: #{tpu_custom_call.1}
  #allocation0 [shape = 'u32[]', space=smem, size = 0x4, offset = 0x4, fixed_abs, tag = 'smem constant byte address 0x4 - core index']
  #allocation1 [shape = 'u32[144,128]{1,0:T(1,128)}', space=vmem, size = 0x12000, scoped, tag = 'internal scratch']
  %s0 = inlined_call_operand.hbm [shape: bf16[8,20], index: 0, kind: input, shape index: {}]
  %s1 = inlined_call_operand.hbm [shape: f32[8,128], index: 1, kind: input, shape index: {}]
  %s2 = inlined_call_operand.hbm [shape: f32[8,128], index: 2, kind: input, shape index: {}]
  %s3 = inlined_call_operand.hbm [shape: bf16[20,512], index: 3, kind: input, shape index: {}]
  %s4 = inlined_call_operand.vmem [shape: bf16[4,512], index: 4, kind: input, shape index: {}]
  %s5 = inlined_call_operand.hbm [shape: bf16[2,8,512], index: 5, kind: input, shape index: {}]
  %s6 = inlined_call_operand.vmem [shape: f32[3,1,512], index: 6, kind: input, shape index: {}]
  %s7 = inlined_call_operand.hbm [shape: bf16[128,512], index: 7, kind: input, shape index: {}]
  %s8 = inlined_call_operand.hbm [shape: f32[8,128], index: 8, kind: output, shape index: {}]
  %s9 = sld [smem:[#allocation0]]
  $region66: #{tpu_custom_call.1} parent=0
    _
  %s11 = ssub.s32 1, %s9
  %s12 = scalar_select 0, %s11, %s9
  $region1: #{tpu_custom_call.1} parent=0
    #allocation2 [shape = 'u8[2048]{0}', space=vmem, size = 0x800, scoped, tag = 'input window, operand 0, single buffered']
    #allocation3 [shape = 's32[1]{0}', space=sflag, size = 0x4, scoped, tag = 'scoped memory for tpu_custom_call.1']
    #allocation4 [shape = 's32[1]{0}', space=sflag, size = 0x4, scoped, tag = 'scoped memory for tpu_custom_call.1']
    #allocation5 [shape = 'u8[4096]{0}', space=vmem, size = 0x1000, scoped, tag = 'input window, operand 1, single buffered']
    #allocation6 [shape = 's32[1]{0}', space=sflag, size = 0x4, scoped, tag = 'scoped memory for tpu_custom_call.1']
    #allocation7 [shape = 'u8[4096]{0}', space=vmem, size = 0x1000, scoped, tag = 'input window, operand 2, single buffered']
    #allocation8 [shape = 'u8[24576]{0}', space=vmem, size = 0x6000, scoped, tag = 'input window, operand 3, single buffered']
    #allocation9 [shape = 's32[1]{0}', space=sflag, size = 0x4, scoped, tag = 'scoped memory for tpu_custom_call.1']
    #allocation10 [shape = 'u8[16384]{0}', space=vmem, size = 0x4000, scoped, tag = 'input window, operand 5, single buffered']
    #allocation11 [shape = 'u8[131072]{0}', space=vmem, size = 0x20000, scoped, tag = 'input window, operand 7, single buffered']
    #allocation12 [shape = 's32[1]{0}', space=sflag, size = 0x4, scoped, tag = 'scoped memory for tpu_custom_call.1']
    #allocation13 [shape = 'u8[4096]{0}', space=vmem, size = 0x1000, scoped, tag = 'output window, operand 0, single buffered']
    %13 = vsyncpa [#allocation3], 0
    %14 = vsyncpa [#allocation6], 0
    %15 = vsyncpa [#allocation9], 0
    %16 = vsyncpa [#allocation12], 0
    %17 = vsyncpa [#allocation4], 0
    // Predicated region
    $region2: #{tpu_custom_call.1} parent=1 // pred_check
      _
    $region3: #{tpu_custom_call.1} parent=1 // pred_check_branch
      %19 = sbr.rel (0) target = $region5
    $region4: #{tpu_custom_call.1} parent=1 // pred_region
      %s21 = ssub.s32 64, 64
      %22 = vsyncadd [#allocation3], %s21
      %s24 = sshll.u32 [#allocation2], 4
      %s25 = int_to_ptr.vmem [resolvable:$true] %s24
      %27 = dma.hbm_to_vmem [thread:$0]  %s0, 64, %s25, [#allocation3]
    $region5: #{tpu_custom_call.1} parent=1 // pred_fallthru
      _
    // Predicated region
    $region6: #{tpu_custom_call.1} parent=1 // pred_check
      _
    $region7: #{tpu_custom_call.1} parent=1 // pred_check_branch
      %29 = sbr.rel (0) target = $region9
    $region8: #{tpu_custom_call.1} parent=1 // pred_region
      %s31 = ssub.s32 128, 128
      %32 = vsyncadd [#allocation6], %s31
      %s34 = sshll.u32 [#allocation5], 4
      %s35 = int_to_ptr.vmem [resolvable:$true] %s34
      %37 = dma.hbm_to_vmem [thread:$0]  %s1, 128, %s35, [#allocation6]
    $region9: #{tpu_custom_call.1} parent=1 // pred_fallthru
      _
    // Predicated region
    $region10: #{tpu_custom_call.1} parent=1 // pred_check
      _
    $region11: #{tpu_custom_call.1} parent=1 // pred_check_branch
      %39 = sbr.rel (0) target = $region13
    $region12: #{tpu_custom_call.1} parent=1 // pred_region
      %s41 = ssub.s32 128, 128
      %42 = vsyncadd [#allocation6], %s41
      %s44 = sshll.u32 [#allocation7], 4
      %s45 = int_to_ptr.vmem [resolvable:$true] %s44
      %47 = dma.hbm_to_vmem [thread:$0]  %s2, 128, %s45, [#allocation6]
    $region13: #{tpu_custom_call.1} parent=1 // pred_fallthru
      _
    // Predicated region
    $region14: #{tpu_custom_call.1} parent=1 // pred_check
      _
    $region15: #{tpu_custom_call.1} parent=1 // pred_check_branch
      %49 = sbr.rel (0) target = $region17
    $region16: #{tpu_custom_call.1} parent=1 // pred_region
      %s51 = ssub.s32 768, 768
      %52 = vsyncadd [#allocation9], %s51
      %s53 = sshll.u32 [#allocation8], 4
      %s54 = int_to_ptr.vmem [resolvable:$true] %s53
      %59 = dma.hbm_to_vmem [thread:$0]  %s3, 768, %s54, [#allocation9], 256, 256, 16
    $region17: #{tpu_custom_call.1} parent=1 // pred_fallthru
      _
    // Predicated region
    $region18: #{tpu_custom_call.1} parent=1 // pred_check
      _
    $region19: #{tpu_custom_call.1} parent=1 // pred_check_branch
      %61 = sbr.rel (0) target = $region21
    $region20: #{tpu_custom_call.1} parent=1 // pred_region
      _
    $region21: #{tpu_custom_call.1} parent=1 // pred_fallthru
      _
    // Predicated region
    $region22: #{tpu_custom_call.1} parent=1 // pred_check
      _
    $region23: #{tpu_custom_call.1} parent=1 // pred_check_branch
      %63 = sbr.rel (0) target = $region25
    $region24: #{tpu_custom_call.1} parent=1 // pred_region
      %s65 = ssub.s32 512, 512
      %66 = vsyncadd [#allocation9], %s65
      %s67 = sshll.u32 [#allocation10], 4
      %s68 = int_to_ptr.vmem [resolvable:$true] %s67
      %73 = dma.hbm_to_vmem [thread:$0]  %s5, 512, %s68, [#allocation9], 256, 256, 16
    $region25: #{tpu_custom_call.1} parent=1 // pred_fallthru
      _
    // Predicated region
    $region26: #{tpu_custom_call.1} parent=1 // pred_check
      _
    $region27: #{tpu_custom_call.1} parent=1 // pred_check_branch
      %75 = sbr.rel (0) target = $region29
    $region28: #{tpu_custom_call.1} parent=1 // pred_region
      _
    $region29: #{tpu_custom_call.1} parent=1 // pred_fallthru
      _
    // Predicated region
    $region30: #{tpu_custom_call.1} parent=1 // pred_check
      _
    $region31: #{tpu_custom_call.1} parent=1 // pred_check_branch
      %77 = sbr.rel (0) target = $region33
    $region32: #{tpu_custom_call.1} parent=1 // pred_region
      %s79 = ssub.s32 4096, 4096
      %80 = vsyncadd [#allocation12], %s79
      %s81 = sshll.u32 [#allocation11], 4
      %s82 = int_to_ptr.vmem [resolvable:$true] %s81
      %87 = dma.hbm_to_vmem [thread:$0]  %s7, 4096, %s82, [#allocation12], 256, 256, 16
    $region33: #{tpu_custom_call.1} parent=1 // pred_fallthru
      _
    // Predicated region
    $region34: #{tpu_custom_call.1} parent=1 // pred_check
      _
    $region35: #{tpu_custom_call.1} parent=1 // pred_check_branch
      %89 = sbr.rel (0) target = $region37
    $region36: #{tpu_custom_call.1} parent=1 // pred_region
      %90 = dma.done [#allocation3], 64
    $region37: #{tpu_custom_call.1} parent=1 // pred_fallthru
      _
    // Predicated region
    $region38: #{tpu_custom_call.1} parent=1 // pred_check
      _
    $region39: #{tpu_custom_call.1} parent=1 // pred_check_branch
      %92 = sbr.rel (0) target = $region41
    $region40: #{tpu_custom_call.1} parent=1 // pred_region
      %93 = dma.done [#allocation6], 128
    $region41: #{tpu_custom_call.1} parent=1 // pred_fallthru
      _
    // Predicated region
    $region42: #{tpu_custom_call.1} parent=1 // pred_check
      _
    $region43: #{tpu_custom_call.1} parent=1 // pred_check_branch
      %95 = sbr.rel (0) target = $region45
    $region44: #{tpu_custom_call.1} parent=1 // pred_region
      %96 = dma.done [#allocation6], 128
    $region45: #{tpu_custom_call.1} parent=1 // pred_fallthru
      _
    // Predicated region
    $region46: #{tpu_custom_call.1} parent=1 // pred_check
      _
    $region47: #{tpu_custom_call.1} parent=1 // pred_check_branch
      %98 = sbr.rel (0) target = $region49
    $region48: #{tpu_custom_call.1} parent=1 // pred_region
      %99 = dma.done [#allocation9], 768
    $region49: #{tpu_custom_call.1} parent=1 // pred_fallthru
      _
    // Predicated region
    $region50: #{tpu_custom_call.1} parent=1 // pred_check
      _
    $region51: #{tpu_custom_call.1} parent=1 // pred_check_branch
      %101 = sbr.rel (0) target = $region53
    $region52: #{tpu_custom_call.1} parent=1 // pred_region
      %102 = dma.done [#allocation9], 512
    $region53: #{tpu_custom_call.1} parent=1 // pred_fallthru
      _
    // Predicated region
    $region54: #{tpu_custom_call.1} parent=1 // pred_check
      _
    $region55: #{tpu_custom_call.1} parent=1 // pred_check_branch
      %104 = sbr.rel (0) target = $region57
    $region56: #{tpu_custom_call.1} parent=1 // pred_region
      %105 = dma.done [#allocation12], 4096
    $region57: #{tpu_custom_call.1} parent=1 // pred_fallthru
      _
    %v107 = vld [vmem:[#allocation2] sm:$0xf]
    %v108 = vld [vmem:[#allocation11] sm:$0xff]
    %v109 = vld [vmem:[#allocation11 + $0x8] sm:$0xff]
    %v110 = vld [vmem:[#allocation11 + $0x10] sm:$0xff]
    %v111 = vld [vmem:[#allocation11 + $0x18] sm:$0xff]
    %v112 = vld [vmem:[#allocation11 + $0x20] sm:$0xff]
    %v113 = vld [vmem:[#allocation11 + $0x28] sm:$0xff]
    %v114 = vld [vmem:[#allocation11 + $0x30] sm:$0xff]
    %v115 = vld [vmem:[#allocation11 + $0x38] sm:$0xff]
    %v116 = vld [vmem:[#allocation11 + $0x40] sm:$0xff]
    %v117 = vld [vmem:[#allocation11 + $0x48] sm:$0xff]
    %v118 = vld [vmem:[#allocation11 + $0x50] sm:$0xff]
    %v119 = vld [vmem:[#allocation11 + $0x58] sm:$0xff]
    %v120 = vld [vmem:[#allocation11 + $0x60] sm:$0xff]
    %v121 = vld [vmem:[#allocation11 + $0x68] sm:$0xff]
    %v122 = vld [vmem:[#allocation11 + $0x70] sm:$0xff]
    %v123 = vld [vmem:[#allocation11 + $0x78] sm:$0xff]
    %v124 = vld [vmem:[#allocation11 + $0x80] sm:$0xff]
    %v125 = vld [vmem:[#allocation11 + $0x88] sm:$0xff]
    %v126 = vld [vmem:[#allocation11 + $0x90] sm:$0xff]
    %v127 = vld [vmem:[#allocation11 + $0x98] sm:$0xff]
    %v128 = vld [vmem:[#allocation11 + $0xa0] sm:$0xff]
    %v129 = vld [vmem:[#allocation11 + $0xa8] sm:$0xff]
    %v130 = vld [vmem:[#allocation11 + $0xb0] sm:$0xff]
    %v131 = vld [vmem:[#allocation11 + $0xb8] sm:$0xff]
    %v132 = vld [vmem:[#allocation11 + $0xc0] sm:$0xff]
    %v133 = vld [vmem:[#allocation11 + $0xc8] sm:$0xff]
    %v134 = vld [vmem:[#allocation11 + $0xd0] sm:$0xff]
    %v135 = vld [vmem:[#allocation11 + $0xd8] sm:$0xff]
    %v136 = vld [vmem:[#allocation11 + $0xe0] sm:$0xff]
    %v137 = vld [vmem:[#allocation11 + $0xe8] sm:$0xff]
    %v138 = vld [vmem:[#allocation11 + $0xf0] sm:$0xff]
    %v139 = vld [vmem:[#allocation11 + $0xf8] sm:$0xff]
    %v140 = vld [vmem:[#allocation8] sm:$0xff]
    %v141 = vld [vmem:[#allocation8 + $0x8] sm:$0xff]
    %v142 = vld [vmem:[#allocation8 + $0x10] sm:$0xff]
    %v143 = vld [vmem:[#allocation8 + $0x18] sm:$0xff]
    %v144 = vld [vmem:[#allocation8 + $0x20] sm:$0x33]
    %v145 = vld [vmem:[#allocation8 + $0x28] sm:$0x33]
    %v152 = vunpack.c.l.b16 %v140
    %v153 = vunpack.c.h.b16 %v140
    %v154 = vunpack.c.l.b16 %v141
    %v155 = vunpack.c.h.b16 %v141
    %v156 = vunpack.c.l.b16 %v142
    %v157 = vunpack.c.h.b16 %v142
    %v158 = vunpack.c.l.b16 %v143
    %v159 = vunpack.c.h.b16 %v143
    %v160 = vunpack.c.l.b16 %v144
    %v161 = vunpack.c.h.b16 %v144
    %v162 = vunpack.c.l.b16 %v145
    %v163 = vunpack.c.h.b16 %v145
    %v164 = vpack.c.b16 %v156, %v152
    %v165 = vpack.c.b16 %v157, %v153
    %v166 = vpack.c.b16 %v158, %v154
    %v167 = vpack.c.b16 %v159, %v155
    %v168 = vpack.c.b16 %v160, %v160
    %v169 = vpack.c.b16 %v161, %v161
    %v170 = vpack.c.b16 %v162, %v162
    %v171 = vpack.c.b16 %v163, %v163
    %vm176 = vcmask 162816
    %v178 = vsel %vm176, %v107, 0
    %vm180 = vcmask 1041408
    %v182 = vsel %vm180, %v168, 0
    %v185 = vsel %vm180, %v169, 0
    %v188 = vsel %vm180, %v170, 0
    %v191 = vsel %vm180, %v171, 0
    %193 = vmatprep.subr.bf16.mxu0 %v165
    %194 = vmatpush1.bf16.msra.mxu0 %v164
    %195 = vmatprep.subr.bf16.mxu0 %v185
    %196 = vmatpush1.bf16.msra.mxu0 %v182
    %197 = vmatprep.subr.bf16.mxu0 0
    %198 = vmatpush1.bf16.msra.mxu0 0
    %199 = vmatprep.subr.bf16.mxu0 0
    %200 = vmatpush1.bf16.msra.mxu0 0
    %201 = vmatprep.subr.bf16.mxu0 0
    %202 = vmatpush1.bf16.msra.mxu0 0
    %203 = vmatprep.subr.bf16.mxu0 0
    %204 = vmatpush1.bf16.msra.mxu0 0
    %205 = vmatprep.subr.bf16.mxu0 0
    %206 = vmatpush1.bf16.msra.mxu0 0
    %207 = vmatprep.subr.bf16.mxu0 0
    %208 = vmatpush1.bf16.msra.mxu0 0
    %209 = vmatprep.subr.bf16.mxu0 0
    %210 = vmatpush1.bf16.msra.mxu0 0
    %211 = vmatprep.subr.bf16.mxu0 0
    %212 = vmatpush1.bf16.msra.mxu0 0
    %213 = vmatprep.subr.bf16.mxu0 0
    %214 = vmatpush1.bf16.msra.mxu0 0
    %215 = vmatprep.subr.bf16.mxu0 0
    %216 = vmatpush1.bf16.msra.mxu0 0
    %217 = vmatprep.subr.bf16.mxu0 0
    %218 = vmatpush1.bf16.msra.mxu0 0
    %219 = vmatprep.subr.bf16.mxu0 0
    %220 = vmatpush1.bf16.msra.mxu0 0
    %221 = vmatprep.subr.bf16.mxu0 0
    %222 = vmatpush1.bf16.msra.mxu0 0
    %223 = vmatprep.subr.bf16.mxu0 0
    %224 = vmatpush1.bf16.msra.mxu0 0
    %225 = vmatprep.mubr.bf16.mxu0 0
    %226 = vmatmul.mubr.bf16.gmra.mrb[0].mxu0 %v178
    %v227 = vpop.f32.mrb[0].mxu0
    %v228 = vadd.f32 0.0, %v227
    %v229 = vpop.f32.mrb[0].mxu0
    %v230 = vadd.f32 0.0, %v229
    %v231 = vpop.f32.mrb[0].mxu0
    %v232 = vpop.f32.mrb[0].mxu0
    %233 = vdwg.mxu0
    %234 = vmatprep.subr.bf16.mxu0 %v167
    %235 = vmatpush1.bf16.msra.mxu0 %v166
    %236 = vmatprep.subr.bf16.mxu0 %v191
    %237 = vmatpush1.bf16.msra.mxu0 %v188
    %238 = vmatprep.subr.bf16.mxu0 0
    %239 = vmatpush1.bf16.msra.mxu0 0
    %240 = vmatprep.subr.bf16.mxu0 0
    %241 = vmatpush1.bf16.msra.mxu0 0
    %242 = vmatprep.subr.bf16.mxu0 0
    %243 = vmatpush1.bf16.msra.mxu0 0
    %244 = vmatprep.subr.bf16.mxu0 0
    %245 = vmatpush1.bf16.msra.mxu0 0
    %246 = vmatprep.subr.bf16.mxu0 0
    %247 = vmatpush1.bf16.msra.mxu0 0
    %248 = vmatprep.subr.bf16.mxu0 0
    %249 = vmatpush1.bf16.msra.mxu0 0
    %250 = vmatprep.subr.bf16.mxu0 0
    %251 = vmatpush1.bf16.msra.mxu0 0
    %252 = vmatprep.subr.bf16.mxu0 0
    %253 = vmatpush1.bf16.msra.mxu0 0
    %254 = vmatprep.subr.bf16.mxu0 0
    %255 = vmatpush1.bf16.msra.mxu0 0
    %256 = vmatprep.subr.bf16.mxu0 0
    %257 = vmatpush1.bf16.msra.mxu0 0
    %258 = vmatprep.subr.bf16.mxu0 0
    %259 = vmatpush1.bf16.msra.mxu0 0
    %260 = vmatprep.subr.bf16.mxu0 0
    %261 = vmatpush1.bf16.msra.mxu0 0
    %262 = vmatprep.subr.bf16.mxu0 0
    %263 = vmatpush1.bf16.msra.mxu0 0
    %264 = vmatprep.subr.bf16.mxu0 0
    %265 = vmatpush1.bf16.msra.mxu0 0
    %266 = vmatprep.mubr.bf16.mxu0 0
    %267 = vmatmul.mubr.bf16.gmra.mrb[0].mxu0 %v178
    %v268 = vpop.f32.mrb[0].mxu0
    %v269 = vadd.f32 0.0, %v268
    %v270 = vpop.f32.mrb[0].mxu0
    %v271 = vadd.f32 0.0, %v270
    %v272 = vpop.f32.mrb[0].mxu0
    %v273 = vpop.f32.mrb[0].mxu0
    %274 = vdwg.mxu0
    %v275 = vld [vmem:[%s4] sm:$0xff]
    %v276 = vld [vmem:[#allocation10] sm:$0xff]
    %v277 = vld [vmem:[#allocation10 + $0x8] sm:$0xff]
    %s278 = scalar_lea.vmem [#allocation10], 16
    %v279 = vld [vmem:[%s278] sm:$0xff]
    %v280 = vld [vmem:[%s278 + $0x8] sm:$0xff]
    %v281 = vld [vmem:[%s6] sm:$0xf]
    %v283 = vlaneseq
    %v284 = vshrl.u32 %v283, 7
    %v285 = vsub.s32 0, %v284
    %v286 = vrot.slane %v281, %v285
    %v287 = vlaneseq
    %v288 = vshrl.u32 %v287, 7
    %v289 = vsub.s32 1, %v288
    %v290 = vrot.slane %v281, %v289
    %v291 = vlaneseq
    %v292 = vshrl.u32 %v291, 7
    %v293 = vsub.s32 2, %v292
    %v294 = vrot.slane %v281, %v293
    %v295 = vlaneseq
    %v296 = vshrl.u32 %v295, 7
    %v297 = vsub.s32 3, %v296
    %v298 = vrot.slane %v281, %v297
    %s303 = scalar_lea.vmem %s6, 4
    %v304 = vld [vmem:[%s303] sm:$0xf]
    %v306 = vlaneseq
    %v307 = vshrl.u32 %v306, 7
    %v308 = vsub.s32 0, %v307
    %v309 = vrot.slane %v304, %v308
    %v310 = vlaneseq
    %v311 = vshrl.u32 %v310, 7
    %v312 = vsub.s32 1, %v311
    %v313 = vrot.slane %v304, %v312
    %v314 = vlaneseq
    %v315 = vshrl.u32 %v314, 7
    %v316 = vsub.s32 2, %v315
    %v317 = vrot.slane %v304, %v316
    %v318 = vlaneseq
    %v319 = vshrl.u32 %v318, 7
    %v320 = vsub.s32 3, %v319
    %v321 = vrot.slane %v304, %v320
    %s326 = scalar_lea.vmem %s6, 8
    %v327 = vld [vmem:[%s326] sm:$0xf]
    %v329 = vlaneseq
    %v330 = vshrl.u32 %v329, 7
    %v331 = vsub.s32 0, %v330
    %v332 = vrot.slane %v327, %v331
    %v333 = vlaneseq
    %v334 = vshrl.u32 %v333, 7
    %v335 = vsub.s32 1, %v334
    %v336 = vrot.slane %v327, %v335
    %v337 = vlaneseq
    %v338 = vshrl.u32 %v337, 7
    %v339 = vsub.s32 2, %v338
    %v340 = vrot.slane %v327, %v339
    %v341 = vlaneseq
    %v342 = vshrl.u32 %v341, 7
    %v343 = vsub.s32 3, %v342
    %v344 = vrot.slane %v327, %v343
    %v350 = vcombine.high %v275, %v275
    %v352 = vunpack.c.l.s4 1983009808
    %v353 = vunpack.c.0.s8 %v352
    %v354 = vlaneseq
    %v355 = vshrl.u32 %v354, 7
    %v356 = vsub.s32 %v353, %v355
    %v357 = vrot.slane %v275, %v356
    %v359 = vunpack.c.l.s4 1983009808
    %v360 = vunpack.c.0.s8 %v359
    %v361 = vlaneseq
    %v362 = vshrl.u32 %v361, 7
    %v363 = vsub.s32 %v360, %v362
    %v364 = vrot.slane %v350, %v363
    %v365 = vcombine.high %v357, %v357
    %v366 = vcombine.high %v364, %v364
    %vm367 = vcmask 31744
    %v369 = vsel %vm367, 0, 0
    %v372 = vsel %vm180, %v357, 0
    %v375 = vsel %vm180, %v365, 0
    %v378 = vsel %vm180, %v364, 0
    %v381 = vsel %vm180, %v366, 0
    %383 = vmatprep.subr.bf16.mxu0 %v375
    %384 = vmatpush1.bf16.msra.mxu0 %v372
    %385 = vmatprep.subr.bf16.mxu0 0
    %386 = vmatpush1.bf16.msra.mxu0 0
    %387 = vmatprep.subr.bf16.mxu0 0
    %388 = vmatpush1.bf16.msra.mxu0 0
    %389 = vmatprep.subr.bf16.mxu0 0
    %390 = vmatpush1.bf16.msra.mxu0 0
    %391 = vmatprep.subr.bf16.mxu0 0
    %392 = vmatpush1.bf16.msra.mxu0 0
    %393 = vmatprep.subr.bf16.mxu0 0
    %394 = vmatpush1.bf16.msra.mxu0 0
    %395 = vmatprep.subr.bf16.mxu0 0
    %396 = vmatpush1.bf16.msra.mxu0 0
    %397 = vmatprep.subr.bf16.mxu0 0
    %398 = vmatpush1.bf16.msra.mxu0 0
    %399 = vmatprep.subr.bf16.mxu0 0
    %400 = vmatpush1.bf16.msra.mxu0 0
    %401 = vmatprep.subr.bf16.mxu0 0
    %402 = vmatpush1.bf16.msra.mxu0 0
    %403 = vmatprep.subr.bf16.mxu0 0
    %404 = vmatpush1.bf16.msra.mxu0 0
    %405 = vmatprep.subr.bf16.mxu0 0
    %406 = vmatpush1.bf16.msra.mxu0 0
    %407 = vmatprep.subr.bf16.mxu0 0
    %408 = vmatpush1.bf16.msra.mxu0 0
    %409 = vmatprep.subr.bf16.mxu0 0
    %410 = vmatpush1.bf16.msra.mxu0 0
    %411 = vmatprep.subr.bf16.mxu0 0
    %412 = vmatpush1.bf16.msra.mxu0 0
    %413 = vmatprep.subr.bf16.mxu0 0
    %414 = vmatpush1.bf16.msra.mxu0 0
    %415 = vmatprep.mubr.bf16.mxu0 0
    %416 = vmatmul.mubr.bf16.gmra.mrb[0].mxu0 %v369
    %v417 = vpop.f32.mrb[0].mxu0
    %v418 = vadd.f32 0.0, %v417
    %v419 = vpop.f32.mrb[0].mxu0
    %v420 = vadd.f32 0.0, %v419
    %v421 = vpop.f32.mrb[0].mxu0
    %v422 = vpop.f32.mrb[0].mxu0
    %423 = vdwg.mxu0
    %424 = vmatprep.subr.bf16.mxu0 %v381
    %425 = vmatpush1.bf16.msra.mxu0 %v378
    %426 = vmatprep.subr.bf16.mxu0 0
    %427 = vmatpush1.bf16.msra.mxu0 0
    %428 = vmatprep.subr.bf16.mxu0 0
    %429 = vmatpush1.bf16.msra.mxu0 0
    %430 = vmatprep.subr.bf16.mxu0 0
    %431 = vmatpush1.bf16.msra.mxu0 0
    %432 = vmatprep.subr.bf16.mxu0 0
    %433 = vmatpush1.bf16.msra.mxu0 0
    %434 = vmatprep.subr.bf16.mxu0 0
    %435 = vmatpush1.bf16.msra.mxu0 0
    %436 = vmatprep.subr.bf16.mxu0 0
    %437 = vmatpush1.bf16.msra.mxu0 0
    %438 = vmatprep.subr.bf16.mxu0 0
    %439 = vmatpush1.bf16.msra.mxu0 0
    %440 = vmatprep.subr.bf16.mxu0 0
    %441 = vmatpush1.bf16.msra.mxu0 0
    %442 = vmatprep.subr.bf16.mxu0 0
    %443 = vmatpush1.bf16.msra.mxu0 0
    %444 = vmatprep.subr.bf16.mxu0 0
    %445 = vmatpush1.bf16.msra.mxu0 0
    %446 = vmatprep.subr.bf16.mxu0 0
    %447 = vmatpush1.bf16.msra.mxu0 0
    %448 = vmatprep.subr.bf16.mxu0 0
    %449 = vmatpush1.bf16.msra.mxu0 0
    %450 = vmatprep.subr.bf16.mxu0 0
    %451 = vmatpush1.bf16.msra.mxu0 0
    %452 = vmatprep.subr.bf16.mxu0 0
    %453 = vmatpush1.bf16.msra.mxu0 0
    %454 = vmatprep.subr.bf16.mxu0 0
    %455 = vmatpush1.bf16.msra.mxu0 0
    %456 = vmatprep.mubr.bf16.mxu0 0
    %457 = vmatmul.mubr.bf16.gmra.mrb[0].mxu0 %v369
    %v458 = vpop.f32.mrb[0].mxu0
    %v459 = vadd.f32 0.0, %v458
    %v460 = vpop.f32.mrb[0].mxu0
    %v461 = vadd.f32 0.0, %v460
    %v462 = vpop.f32.mrb[0].mxu0
    %v463 = vpop.f32.mrb[0].mxu0
    %464 = vdwg.mxu0
    %v465 = vadd.f32 %v228, %v418
    %v466 = vadd.f32 %v230, %v420
    %v467 = vadd.f32 %v269, %v459
    %v468 = vadd.f32 %v271, %v461
    %v469 = vadd.f32 %v465, %v286
    %v470 = vadd.f32 %v466, %v290
    %v471 = vadd.f32 %v467, %v294
    %v472 = vadd.f32 %v468, %v298
    %v473 = vxor.u32 %v469, 2147483648
    %v474 = vmul.f32 %v473, 1.442695
    %v475 = vpow.pop %v474
    %v476 = vadd.f32 %v475, 1.0
    %v477 = vrcp.pop %v476
    %v478 = vmul.f32 1.0, %v477
    %v479 = vxor.u32 %v470, 2147483648
    %v480 = vmul.f32 %v479, 1.442695
    %v481 = vpow.pop %v480
    %v482 = vadd.f32 %v481, 1.0
    %v483 = vrcp.pop %v482
    %v484 = vmul.f32 1.0, %v483
    %v485 = vtanh.pop %v471
    %v486 = vxor.u32 %v472, 2147483648
    %v487 = vmul.f32 %v486, 1.442695
    %v488 = vpow.pop %v487
    %v489 = vadd.f32 %v488, 1.0
    %v490 = vrcp.pop %v489
    %v491 = vmul.f32 1.0, %v490
    %v492 = vmul.f32 %v484, 0.0
    %v493 = vmul.f32 %v478, %v485
    %v494 = vadd.f32 %v492, %v493
    %v495 = vtanh.pop %v494
    %v496 = vmul.f32 %v491, %v495
    %v497 = vpack.c.bf16 %v496, %v496
    %v499 = vsel %vm367, %v497, 0
    %v502 = vunpack.c.l.b16 %v276
    %v503 = vunpack.c.h.b16 %v276
    %v504 = vunpack.c.l.b16 %v277
    %v505 = vunpack.c.h.b16 %v277
    %v506 = vpack.c.b16 %v502, %v502
    %v507 = vpack.c.b16 %v503, %v503
    %v508 = vpack.c.b16 %v504, %v504
    %v509 = vpack.c.b16 %v505, %v505
    %vm510 = vcmask 64512
    %v511 = vsel %vm510, %v499, 0
    %vm513 = vcmask 1043456
    %v515 = vsel %vm513, %v506, 0
    %v518 = vsel %vm513, %v507, 0
    %v521 = vsel %vm513, %v508, 0
    %v524 = vsel %vm513, %v509, 0
    %526 = vmatprep.subr.bf16.mxu0 %v518
    %527 = vmatpush1.bf16.msra.mxu0 %v515
    %528 = vmatprep.subr.bf16.mxu0 0
    %529 = vmatpush1.bf16.msra.mxu0 0
    %530 = vmatprep.subr.bf16.mxu0 0
    %531 = vmatpush1.bf16.msra.mxu0 0
    %532 = vmatprep.subr.bf16.mxu0 0
    %533 = vmatpush1.bf16.msra.mxu0 0
    %534 = vmatprep.subr.bf16.mxu0 0
    %535 = vmatpush1.bf16.msra.mxu0 0
    %536 = vmatprep.subr.bf16.mxu0 0
    %537 = vmatpush1.bf16.msra.mxu0 0
    %538 = vmatprep.subr.bf16.mxu0 0
    %539 = vmatpush1.bf16.msra.mxu0 0
    %540 = vmatprep.subr.bf16.mxu0 0
    %541 = vmatpush1.bf16.msra.mxu0 0
    %542 = vmatprep.subr.bf16.mxu0 0
    %543 = vmatpush1.bf16.msra.mxu0 0
    %544 = vmatprep.subr.bf16.mxu0 0
    %545 = vmatpush1.bf16.msra.mxu0 0
    %546 = vmatprep.subr.bf16.mxu0 0
    %547 = vmatpush1.bf16.msra.mxu0 0
    %548 = vmatprep.subr.bf16.mxu0 0
    %549 = vmatpush1.bf16.msra.mxu0 0
    %550 = vmatprep.subr.bf16.mxu0 0
    %551 = vmatpush1.bf16.msra.mxu0 0
    %552 = vmatprep.subr.bf16.mxu0 0
    %553 = vmatpush1.bf16.msra.mxu0 0
    %554 = vmatprep.subr.bf16.mxu0 0
    %555 = vmatpush1.bf16.msra.mxu0 0
    %556 = vmatprep.subr.bf16.mxu0 0
    %557 = vmatpush1.bf16.msra.mxu0 0
    %558 = vmatprep.mubr.bf16.mxu0 0
    %559 = vmatmul.mubr.bf16.gmra.mrb[0].mxu0 %v511
    %v560 = vpop.f32.mrb[0].mxu0
    %v561 = vadd.f32 %v309, %v560
    %v562 = vpop.f32.mrb[0].mxu0
    %v563 = vadd.f32 %v313, %v562
    %v564 = vpop.f32.mrb[0].mxu0
    %v565 = vpop.f32.mrb[0].mxu0
    %566 = vdwg.mxu0
    %567 = vmatprep.subr.bf16.mxu0 %v524
    %568 = vmatpush1.bf16.msra.mxu0 %v521
    %569 = vmatprep.subr.bf16.mxu0 0
    %570 = vmatpush1.bf16.msra.mxu0 0
    %571 = vmatprep.subr.bf16.mxu0 0
    %572 = vmatpush1.bf16.msra.mxu0 0
    %573 = vmatprep.subr.bf16.mxu0 0
    %574 = vmatpush1.bf16.msra.mxu0 0
    %575 = vmatprep.subr.bf16.mxu0 0
    %576 = vmatpush1.bf16.msra.mxu0 0
    %577 = vmatprep.subr.bf16.mxu0 0
    %578 = vmatpush1.bf16.msra.mxu0 0
    %579 = vmatprep.subr.bf16.mxu0 0
    %580 = vmatpush1.bf16.msra.mxu0 0
    %581 = vmatprep.subr.bf16.mxu0 0
    %582 = vmatpush1.bf16.msra.mxu0 0
    %583 = vmatprep.subr.bf16.mxu0 0
    %584 = vmatpush1.bf16.msra.mxu0 0
    %585 = vmatprep.subr.bf16.mxu0 0
    %586 = vmatpush1.bf16.msra.mxu0 0
    %587 = vmatprep.subr.bf16.mxu0 0
    %588 = vmatpush1.bf16.msra.mxu0 0
    %589 = vmatprep.subr.bf16.mxu0 0
    %590 = vmatpush1.bf16.msra.mxu0 0
    %591 = vmatprep.subr.bf16.mxu0 0
    %592 = vmatpush1.bf16.msra.mxu0 0
    %593 = vmatprep.subr.bf16.mxu0 0
    %594 = vmatpush1.bf16.msra.mxu0 0
    %595 = vmatprep.subr.bf16.mxu0 0
    %596 = vmatpush1.bf16.msra.mxu0 0
    %597 = vmatprep.subr.bf16.mxu0 0
    %598 = vmatpush1.bf16.msra.mxu0 0
    %599 = vmatprep.mubr.bf16.mxu0 0
    %600 = vmatmul.mubr.bf16.gmra.mrb[0].mxu0 %v511
    %v601 = vpop.f32.mrb[0].mxu0
    %v602 = vadd.f32 %v317, %v601
    %v603 = vpop.f32.mrb[0].mxu0
    %v604 = vadd.f32 %v321, %v603
    %v605 = vpop.f32.mrb[0].mxu0
    %v606 = vpop.f32.mrb[0].mxu0
    %607 = vdwg.mxu0
    %v608 = vxor.u32 %v561, 2147483648
    %v609 = vmul.f32 %v608, 1.442695
    %v610 = vpow.pop %v609
    %v611 = vadd.f32 %v610, 1.0
    %v612 = vrcp.pop %v611
    %v613 = vmul.f32 1.0, %v612
    %v614 = vxor.u32 %v563, 2147483648
    %v615 = vmul.f32 %v614, 1.442695
    %v616 = vpow.pop %v615
    %v617 = vadd.f32 %v616, 1.0
    %v618 = vrcp.pop %v617
    %v619 = vmul.f32 1.0, %v618
    %v620 = vtanh.pop %v602
    %v621 = vxor.u32 %v604, 2147483648
    %v622 = vmul.f32 %v621, 1.442695
    %v623 = vpow.pop %v622
    %v624 = vadd.f32 %v623, 1.0
    %v625 = vrcp.pop %v624
    %v626 = vmul.f32 1.0, %v625
    %v627 = vmul.f32 %v619, 0.0
    %v628 = vmul.f32 %v613, %v620
    %v629 = vadd.f32 %v627, %v628
    %v630 = vtanh.pop %v629
    %v631 = vmul.f32 %v626, %v630
    %v632 = vpack.c.bf16 %v631, %v631
    %v634 = vsel %vm367, %v632, 0
    %v637 = vunpack.c.l.b16 %v279
    %v638 = vunpack.c.h.b16 %v279
    %v639 = vunpack.c.l.b16 %v280
    %v640 = vunpack.c.h.b16 %v280
    %v641 = vpack.c.b16 %v637, %v637
    %v642 = vpack.c.b16 %v638, %v638
    %v643 = vpack.c.b16 %v639, %v639
    %v644 = vpack.c.b16 %v640, %v640
    %v645 = vsel %vm510, %v634, 0
    %v648 = vsel %vm513, %v641, 0
    %v651 = vsel %vm513, %v642, 0
    %v654 = vsel %vm513, %v643, 0
    %v657 = vsel %vm513, %v644, 0
    %659 = vmatprep.subr.bf16.mxu0 %v651
    %660 = vmatpush1.bf16.msra.mxu0 %v648
    %661 = vmatprep.subr.bf16.mxu0 0
    %662 = vmatpush1.bf16.msra.mxu0 0
    %663 = vmatprep.subr.bf16.mxu0 0
    %664 = vmatpush1.bf16.msra.mxu0 0
    %665 = vmatprep.subr.bf16.mxu0 0
    %666 = vmatpush1.bf16.msra.mxu0 0
    %667 = vmatprep.subr.bf16.mxu0 0
    %668 = vmatpush1.bf16.msra.mxu0 0
    %669 = vmatprep.subr.bf16.mxu0 0
    %670 = vmatpush1.bf16.msra.mxu0 0
    %671 = vmatprep.subr.bf16.mxu0 0
    %672 = vmatpush1.bf16.msra.mxu0 0
    %673 = vmatprep.subr.bf16.mxu0 0
    %674 = vmatpush1.bf16.msra.mxu0 0
    %675 = vmatprep.subr.bf16.mxu0 0
    %676 = vmatpush1.bf16.msra.mxu0 0
    %677 = vmatprep.subr.bf16.mxu0 0
    %678 = vmatpush1.bf16.msra.mxu0 0
    %679 = vmatprep.subr.bf16.mxu0 0
    %680 = vmatpush1.bf16.msra.mxu0 0
    %681 = vmatprep.subr.bf16.mxu0 0
    %682 = vmatpush1.bf16.msra.mxu0 0
    %683 = vmatprep.subr.bf16.mxu0 0
    %684 = vmatpush1.bf16.msra.mxu0 0
    %685 = vmatprep.subr.bf16.mxu0 0
    %686 = vmatpush1.bf16.msra.mxu0 0
    %687 = vmatprep.subr.bf16.mxu0 0
    %688 = vmatpush1.bf16.msra.mxu0 0
    %689 = vmatprep.subr.bf16.mxu0 0
    %690 = vmatpush1.bf16.msra.mxu0 0
    %691 = vmatprep.mubr.bf16.mxu0 0
    %692 = vmatmul.mubr.bf16.gmra.mrb[0].mxu0 %v645
    %v693 = vpop.f32.mrb[0].mxu0
    %v694 = vadd.f32 %v332, %v693
    %v695 = vpop.f32.mrb[0].mxu0
    %v696 = vadd.f32 %v336, %v695
    %v697 = vpop.f32.mrb[0].mxu0
    %v698 = vpop.f32.mrb[0].mxu0
    %699 = vdwg.mxu0
    %700 = vmatprep.subr.bf16.mxu0 %v657
    %701 = vmatpush1.bf16.msra.mxu0 %v654
    %702 = vmatprep.subr.bf16.mxu0 0
    %703 = vmatpush1.bf16.msra.mxu0 0
    %704 = vmatprep.subr.bf16.mxu0 0
    %705 = vmatpush1.bf16.msra.mxu0 0
    %706 = vmatprep.subr.bf16.mxu0 0
    %707 = vmatpush1.bf16.msra.mxu0 0
    %708 = vmatprep.subr.bf16.mxu0 0
    %709 = vmatpush1.bf16.msra.mxu0 0
    %710 = vmatprep.subr.bf16.mxu0 0
    %711 = vmatpush1.bf16.msra.mxu0 0
    %712 = vmatprep.subr.bf16.mxu0 0
    %713 = vmatpush1.bf16.msra.mxu0 0
    %714 = vmatprep.subr.bf16.mxu0 0
    %715 = vmatpush1.bf16.msra.mxu0 0
    %716 = vmatprep.subr.bf16.mxu0 0
    %717 = vmatpush1.bf16.msra.mxu0 0
    %718 = vmatprep.subr.bf16.mxu0 0
    %719 = vmatpush1.bf16.msra.mxu0 0
    %720 = vmatprep.subr.bf16.mxu0 0
    %721 = vmatpush1.bf16.msra.mxu0 0
    %722 = vmatprep.subr.bf16.mxu0 0
    %723 = vmatpush1.bf16.msra.mxu0 0
    %724 = vmatprep.subr.bf16.mxu0 0
    %725 = vmatpush1.bf16.msra.mxu0 0
    %726 = vmatprep.subr.bf16.mxu0 0
    %727 = vmatpush1.bf16.msra.mxu0 0
    %728 = vmatprep.subr.bf16.mxu0 0
    %729 = vmatpush1.bf16.msra.mxu0 0
    %730 = vmatprep.subr.bf16.mxu0 0
    %731 = vmatpush1.bf16.msra.mxu0 0
    %732 = vmatprep.mubr.bf16.mxu0 0
    %733 = vmatmul.mubr.bf16.gmra.mrb[0].mxu0 %v645
    %v734 = vpop.f32.mrb[0].mxu0
    %v735 = vadd.f32 %v340, %v734
    %v736 = vpop.f32.mrb[0].mxu0
    %v737 = vadd.f32 %v344, %v736
    %v738 = vpop.f32.mrb[0].mxu0
    %v739 = vpop.f32.mrb[0].mxu0
    %740 = vdwg.mxu0
    %v741 = vxor.u32 %v694, 2147483648
    %v742 = vmul.f32 %v741, 1.442695
    %v743 = vpow.pop %v742
    %v744 = vadd.f32 %v743, 1.0
    %v745 = vrcp.pop %v744
    %v746 = vmul.f32 1.0, %v745
    %v747 = vxor.u32 %v696, 2147483648
    %v748 = vmul.f32 %v747, 1.442695
    %v749 = vpow.pop %v748
    %v750 = vadd.f32 %v749, 1.0
    %v751 = vrcp.pop %v750
    %v752 = vmul.f32 1.0, %v751
    %v753 = vtanh.pop %v735
    %v754 = vxor.u32 %v737, 2147483648
    %v755 = vmul.f32 %v754, 1.442695
    %v756 = vpow.pop %v755
    %v757 = vadd.f32 %v756, 1.0
    %v758 = vrcp.pop %v757
    %v759 = vmul.f32 1.0, %v758
    %v760 = vmul.f32 %v752, 0.0
    %v761 = vmul.f32 %v746, %v753
    %v762 = vadd.f32 %v760, %v761
    %v763 = vtanh.pop %v762
    %v764 = vmul.f32 %v759, %v763
    %v765 = vsel %vm367, %v764, -inf
    %766 = vmax.xlane.f32.xlu0 %v765
    %v767 = vpop.xlane.xlu0 %766
    %v768 = vsub.f32 %v764, %v767
    %v769 = vmul.f32 %v768, 1.442695
    %v770 = vpow.pop %v769
    %v771 = vsel %vm367, %v770, 0.0
    %772 = vadd.xlane.f32.xlu0 %v771
    %v773 = vpop.xlane.xlu0 %772
    %v774 = vrcp.pop %v773
    %v775 = vmul.f32 %v770, %v774
    %v776 = vsel %vm367, %v497, 0
    %778 = vmatprep.subr.bf16.mxu0 %v375
    %779 = vmatpush1.bf16.msra.mxu0 %v372
    %780 = vmatprep.subr.bf16.mxu0 0
    %781 = vmatpush1.bf16.msra.mxu0 0
    %782 = vmatprep.subr.bf16.mxu0 0
    %783 = vmatpush1.bf16.msra.mxu0 0
    %784 = vmatprep.subr.bf16.mxu0 0
    %785 = vmatpush1.bf16.msra.mxu0 0
    %786 = vmatprep.subr.bf16.mxu0 0
    %787 = vmatpush1.bf16.msra.mxu0 0
    %788 = vmatprep.subr.bf16.mxu0 0
    %789 = vmatpush1.bf16.msra.mxu0 0
    %790 = vmatprep.subr.bf16.mxu0 0
    %791 = vmatpush1.bf16.msra.mxu0 0
    %792 = vmatprep.subr.bf16.mxu0 0
    %793 = vmatpush1.bf16.msra.mxu0 0
    %794 = vmatprep.subr.bf16.mxu0 0
    %795 = vmatpush1.bf16.msra.mxu0 0
    %796 = vmatprep.subr.bf16.mxu0 0
    %797 = vmatpush1.bf16.msra.mxu0 0
    %798 = vmatprep.subr.bf16.mxu0 0
    %799 = vmatpush1.bf16.msra.mxu0 0
    %800 = vmatprep.subr.bf16.mxu0 0
    %801 = vmatpush1.bf16.msra.mxu0 0
    %802 = vmatprep.subr.bf16.mxu0 0
    %803 = vmatpush1.bf16.msra.mxu0 0
    %804 = vmatprep.subr.bf16.mxu0 0
    %805 = vmatpush1.bf16.msra.mxu0 0
    %806 = vmatprep.subr.bf16.mxu0 0
    %807 = vmatpush1.bf16.msra.mxu0 0
    %808 = vmatprep.subr.bf16.mxu0 0
    %809 = vmatpush1.bf16.msra.mxu0 0
    %810 = vmatprep.mubr.bf16.mxu0 0
    %811 = vmatmul.mubr.bf16.gmra.mrb[0].mxu0 %v776
    %v812 = vpop.f32.mrb[0].mxu0
    %v813 = vadd.f32 0.0, %v812
    %v814 = vpop.f32.mrb[0].mxu0
    %v815 = vadd.f32 0.0, %v814
    %v816 = vpop.f32.mrb[0].mxu0
    %v817 = vpop.f32.mrb[0].mxu0
    %818 = vdwg.mxu0
    %819 = vmatprep.subr.bf16.mxu0 %v381
    %820 = vmatpush1.bf16.msra.mxu0 %v378
    %821 = vmatprep.subr.bf16.mxu0 0
    %822 = vmatpush1.bf16.msra.mxu0 0
    %823 = vmatprep.subr.bf16.mxu0 0
    %824 = vmatpush1.bf16.msra.mxu0 0
    %825 = vmatprep.subr.bf16.mxu0 0
    %826 = vmatpush1.bf16.msra.mxu0 0
    %827 = vmatprep.subr.bf16.mxu0 0
    %828 = vmatpush1.bf16.msra.mxu0 0
    %829 = vmatprep.subr.bf16.mxu0 0
    %830 = vmatpush1.bf16.msra.mxu0 0
    %831 = vmatprep.subr.bf16.mxu0 0
    %832 = vmatpush1.bf16.msra.mxu0 0
    %833 = vmatprep.subr.bf16.mxu0 0
    %834 = vmatpush1.bf16.msra.mxu0 0
    %835 = vmatprep.subr.bf16.mxu0 0
    %836 = vmatpush1.bf16.msra.mxu0 0
    %837 = vmatprep.subr.bf16.mxu0 0
    %838 = vmatpush1.bf16.msra.mxu0 0
    %839 = vmatprep.subr.bf16.mxu0 0
    %840 = vmatpush1.bf16.msra.mxu0 0
    %841 = vmatprep.subr.bf16.mxu0 0
    %842 = vmatpush1.bf16.msra.mxu0 0
    %843 = vmatprep.subr.bf16.mxu0 0
    %844 = vmatpush1.bf16.msra.mxu0 0
    %845 = vmatprep.subr.bf16.mxu0 0
    %846 = vmatpush1.bf16.msra.mxu0 0
    %847 = vmatprep.subr.bf16.mxu0 0
    %848 = vmatpush1.bf16.msra.mxu0 0
    %849 = vmatprep.subr.bf16.mxu0 0
    %850 = vmatpush1.bf16.msra.mxu0 0
    %851 = vmatprep.mubr.bf16.mxu0 0
    %852 = vmatmul.mubr.bf16.gmra.mrb[0].mxu0 %v776
    %v853 = vpop.f32.mrb[0].mxu0
    %v854 = vadd.f32 0.0, %v853
    %v855 = vpop.f32.mrb[0].mxu0
    %v856 = vadd.f32 0.0, %v855
    %v857 = vpop.f32.mrb[0].mxu0
    %v858 = vpop.f32.mrb[0].mxu0
    %859 = vdwg.mxu0
    %v860 = vadd.f32 %v228, %v813
    %v861 = vadd.f32 %v230, %v815
    %v862 = vadd.f32 %v269, %v854
    %v863 = vadd.f32 %v271, %v856
    %v864 = vadd.f32 %v860, %v286
    %v865 = vadd.f32 %v861, %v290
    %v866 = vadd.f32 %v862, %v294
    %v867 = vadd.f32 %v863, %v298
    %v868 = vxor.u32 %v864, 2147483648
    %v869 = vmul.f32 %v868, 1.442695
    %v870 = vpow.pop %v869
    %v871 = vadd.f32 %v870, 1.0
    %v872 = vrcp.pop %v871
    %v873 = vmul.f32 1.0, %v872
    %v874 = vxor.u32 %v865, 2147483648
    %v875 = vmul.f32 %v874, 1.442695
    %v876 = vpow.pop %v875
    %v877 = vadd.f32 %v876, 1.0
    %v878 = vrcp.pop %v877
    %v879 = vmul.f32 1.0, %v878
    %v880 = vtanh.pop %v866
    %v881 = vxor.u32 %v867, 2147483648
    %v882 = vmul.f32 %v881, 1.442695
    %v883 = vpow.pop %v882
    %v884 = vadd.f32 %v883, 1.0
    %v885 = vrcp.pop %v884
    %v886 = vmul.f32 1.0, %v885
    %v887 = vmul.f32 %v879, %v494
    %v888 = vmul.f32 %v873, %v880
    %v889 = vadd.f32 %v887, %v888
    %v890 = vtanh.pop %v889
    %v891 = vmul.f32 %v886, %v890
    %v892 = vpack.c.bf16 %v891, %v891
    %894 = vrot.lane.b32.xlu0 %v632, 4
    %v895 = vpop.permute.xlu0 %894
    %v898 = vsel %vm367, %v892, %v895
    %v899 = vsel %vm510, %v898, 0
    %901 = vmatprep.subr.bf16.mxu0 %v518
    %902 = vmatpush1.bf16.msra.mxu0 %v515
    %903 = vmatprep.subr.bf16.mxu0 0
    %904 = vmatpush1.bf16.msra.mxu0 0
    %905 = vmatprep.subr.bf16.mxu0 0
    %906 = vmatpush1.bf16.msra.mxu0 0
    %907 = vmatprep.subr.bf16.mxu0 0
    %908 = vmatpush1.bf16.msra.mxu0 0
    %909 = vmatprep.subr.bf16.mxu0 0
    %910 = vmatpush1.bf16.msra.mxu0 0
    %911 = vmatprep.subr.bf16.mxu0 0
    %912 = vmatpush1.bf16.msra.mxu0 0
    %913 = vmatprep.subr.bf16.mxu0 0
    %914 = vmatpush1.bf16.msra.mxu0 0
    %915 = vmatprep.subr.bf16.mxu0 0
    %916 = vmatpush1.bf16.msra.mxu0 0
    %917 = vmatprep.subr.bf16.mxu0 0
    %918 = vmatpush1.bf16.msra.mxu0 0
    %919 = vmatprep.subr.bf16.mxu0 0
    %920 = vmatpush1.bf16.msra.mxu0 0
    %921 = vmatprep.subr.bf16.mxu0 0
    %922 = vmatpush1.bf16.msra.mxu0 0
    %923 = vmatprep.subr.bf16.mxu0 0
    %924 = vmatpush1.bf16.msra.mxu0 0
    %925 = vmatprep.subr.bf16.mxu0 0
    %926 = vmatpush1.bf16.msra.mxu0 0
    %927 = vmatprep.subr.bf16.mxu0 0
    %928 = vmatpush1.bf16.msra.mxu0 0
    %929 = vmatprep.subr.bf16.mxu0 0
    %930 = vmatpush1.bf16.msra.mxu0 0
    %931 = vmatprep.subr.bf16.mxu0 0
    %932 = vmatpush1.bf16.msra.mxu0 0
    %933 = vmatprep.mubr.bf16.mxu0 0
    %934 = vmatmul.mubr.bf16.gmra.mrb[0].mxu0 %v899
    %v935 = vpop.f32.mrb[0].mxu0
    %v936 = vadd.f32 %v309, %v935
    %v937 = vpop.f32.mrb[0].mxu0
    %v938 = vadd.f32 %v313, %v937
    %v939 = vpop.f32.mrb[0].mxu0
    %v940 = vpop.f32.mrb[0].mxu0
    %941 = vdwg.mxu0
    %942 = vmatprep.subr.bf16.mxu0 %v524
    %943 = vmatpush1.bf16.msra.mxu0 %v521
    %944 = vmatprep.subr.bf16.mxu0 0
    %945 = vmatpush1.bf16.msra.mxu0 0
    %946 = vmatprep.subr.bf16.mxu0 0
    %947 = vmatpush1.bf16.msra.mxu0 0
    %948 = vmatprep.subr.bf16.mxu0 0
    %949 = vmatpush1.bf16.msra.mxu0 0
    %950 = vmatprep.subr.bf16.mxu0 0
    %951 = vmatpush1.bf16.msra.mxu0 0
    %952 = vmatprep.subr.bf16.mxu0 0
    %953 = vmatpush1.bf16.msra.mxu0 0
    %954 = vmatprep.subr.bf16.mxu0 0
    %955 = vmatpush1.bf16.msra.mxu0 0
    %956 = vmatprep.subr.bf16.mxu0 0
    %957 = vmatpush1.bf16.msra.mxu0 0
    %958 = vmatprep.subr.bf16.mxu0 0
    %959 = vmatpush1.bf16.msra.mxu0 0
    %960 = vmatprep.subr.bf16.mxu0 0
    %961 = vmatpush1.bf16.msra.mxu0 0
    %962 = vmatprep.subr.bf16.mxu0 0
    %963 = vmatpush1.bf16.msra.mxu0 0
    %964 = vmatprep.subr.bf16.mxu0 0
    %965 = vmatpush1.bf16.msra.mxu0 0
    %966 = vmatprep.subr.bf16.mxu0 0
    %967 = vmatpush1.bf16.msra.mxu0 0
    %968 = vmatprep.subr.bf16.mxu0 0
    %969 = vmatpush1.bf16.msra.mxu0 0
    %970 = vmatprep.subr.bf16.mxu0 0
    %971 = vmatpush1.bf16.msra.mxu0 0
    %972 = vmatprep.subr.bf16.mxu0 0
    %973 = vmatpush1.bf16.msra.mxu0 0
    %974 = vmatprep.mubr.bf16.mxu0 0
    %975 = vmatmul.mubr.bf16.gmra.mrb[0].mxu0 %v899
    %v976 = vpop.f32.mrb[0].mxu0
    %v977 = vadd.f32 %v317, %v976
    %v978 = vpop.f32.mrb[0].mxu0
    %v979 = vadd.f32 %v321, %v978
    %v980 = vpop.f32.mrb[0].mxu0
    %v981 = vpop.f32.mrb[0].mxu0
    %982 = vdwg.mxu0
    %v983 = vxor.u32 %v936, 2147483648
    %v984 = vmul.f32 %v983, 1.442695
    %v985 = vpow.pop %v984
    %v986 = vadd.f32 %v985, 1.0
    %v987 = vrcp.pop %v986
    %v988 = vmul.f32 1.0, %v987
    %v989 = vxor.u32 %v938, 2147483648
    %v990 = vmul.f32 %v989, 1.442695
    %v991 = vpow.pop %v990
    %v992 = vadd.f32 %v991, 1.0
    %v993 = vrcp.pop %v992
    %v994 = vmul.f32 1.0, %v993
    %v995 = vtanh.pop %v977
    %v996 = vxor.u32 %v979, 2147483648
    %v997 = vmul.f32 %v996, 1.442695
    %v998 = vpow.pop %v997
    %v999 = vadd.f32 %v998, 1.0
    %v1000 = vrcp.pop %v999
    %v1001 = vmul.f32 1.0, %v1000
    %v1002 = vmul.f32 %v994, %v629
    %v1003 = vmul.f32 %v988, %v995
    %v1004 = vadd.f32 %v1002, %v1003
    %v1005 = vtanh.pop %v1004
    %v1006 = vmul.f32 %v1001, %v1005
    %v1007 = vpack.c.bf16 %v1006, %v1006
    %v1008 = vpack.c.bf16 %v764, %v764
    %1010 = vrot.lane.b32.xlu0 %v1008, 4
    %v1011 = vpop.permute.xlu0 %1010
    %v1014 = vsel %vm367, %v1007, %v1011
    %v1015 = vsel %vm510, %v1014, 0
    %1017 = vmatprep.subr.bf16.mxu0 %v651
    %1018 = vmatpush1.bf16.msra.mxu0 %v648
    %1019 = vmatprep.subr.bf16.mxu0 0
    %1020 = vmatpush1.bf16.msra.mxu0 0
    %1021 = vmatprep.subr.bf16.mxu0 0
    %1022 = vmatpush1.bf16.msra.mxu0 0
    %1023 = vmatprep.subr.bf16.mxu0 0
    %1024 = vmatpush1.bf16.msra.mxu0 0
    %1025 = vmatprep.subr.bf16.mxu0 0
    %1026 = vmatpush1.bf16.msra.mxu0 0
    %1027 = vmatprep.subr.bf16.mxu0 0
    %1028 = vmatpush1.bf16.msra.mxu0 0
    %1029 = vmatprep.subr.bf16.mxu0 0
    %1030 = vmatpush1.bf16.msra.mxu0 0
    %1031 = vmatprep.subr.bf16.mxu0 0
    %1032 = vmatpush1.bf16.msra.mxu0 0
    %1033 = vmatprep.subr.bf16.mxu0 0
    %1034 = vmatpush1.bf16.msra.mxu0 0
    %1035 = vmatprep.subr.bf16.mxu0 0
    %1036 = vmatpush1.bf16.msra.mxu0 0
    %1037 = vmatprep.subr.bf16.mxu0 0
    %1038 = vmatpush1.bf16.msra.mxu0 0
    %1039 = vmatprep.subr.bf16.mxu0 0
    %1040 = vmatpush1.bf16.msra.mxu0 0
    %1041 = vmatprep.subr.bf16.mxu0 0
    %1042 = vmatpush1.bf16.msra.mxu0 0
    %1043 = vmatprep.subr.bf16.mxu0 0
    %1044 = vmatpush1.bf16.msra.mxu0 0
    %1045 = vmatprep.subr.bf16.mxu0 0
    %1046 = vmatpush1.bf16.msra.mxu0 0
    %1047 = vmatprep.subr.bf16.mxu0 0
    %1048 = vmatpush1.bf16.msra.mxu0 0
    %1049 = vmatprep.mubr.bf16.mxu0 0
    %1050 = vmatmul.mubr.bf16.gmra.mrb[0].mxu0 %v1015
    %v1051 = vpop.f32.mrb[0].mxu0
    %v1052 = vadd.f32 %v332, %v1051
    %v1053 = vpop.f32.mrb[0].mxu0
    %v1054 = vadd.f32 %v336, %v1053
    %v1055 = vpop.f32.mrb[0].mxu0
    %v1056 = vpop.f32.mrb[0].mxu0
    %1057 = vdwg.mxu0
    %1058 = vmatprep.subr.bf16.mxu0 %v657
    %1059 = vmatpush1.bf16.msra.mxu0 %v654
    %1060 = vmatprep.subr.bf16.mxu0 0
    %1061 = vmatpush1.bf16.msra.mxu0 0
    %1062 = vmatprep.subr.bf16.mxu0 0
    %1063 = vmatpush1.bf16.msra.mxu0 0
    %1064 = vmatprep.subr.bf16.mxu0 0
    %1065 = vmatpush1.bf16.msra.mxu0 0
    %1066 = vmatprep.subr.bf16.mxu0 0
    %1067 = vmatpush1.bf16.msra.mxu0 0
    %1068 = vmatprep.subr.bf16.mxu0 0
    %1069 = vmatpush1.bf16.msra.mxu0 0
    %1070 = vmatprep.subr.bf16.mxu0 0
    %1071 = vmatpush1.bf16.msra.mxu0 0
    %1072 = vmatprep.subr.bf16.mxu0 0
    %1073 = vmatpush1.bf16.msra.mxu0 0
    %1074 = vmatprep.subr.bf16.mxu0 0
    %1075 = vmatpush1.bf16.msra.mxu0 0
    %1076 = vmatprep.subr.bf16.mxu0 0
    %1077 = vmatpush1.bf16.msra.mxu0 0
    %1078 = vmatprep.subr.bf16.mxu0 0
    %1079 = vmatpush1.bf16.msra.mxu0 0
    %1080 = vmatprep.subr.bf16.mxu0 0
    %1081 = vmatpush1.bf16.msra.mxu0 0
    %1082 = vmatprep.subr.bf16.mxu0 0
    %1083 = vmatpush1.bf16.msra.mxu0 0
    %1084 = vmatprep.subr.bf16.mxu0 0
    %1085 = vmatpush1.bf16.msra.mxu0 0
    %1086 = vmatprep.subr.bf16.mxu0 0
    %1087 = vmatpush1.bf16.msra.mxu0 0
    %1088 = vmatprep.subr.bf16.mxu0 0
    %1089 = vmatpush1.bf16.msra.mxu0 0
    %1090 = vmatprep.mubr.bf16.mxu0 0
    %1091 = vmatmul.mubr.bf16.gmra.mrb[0].mxu0 %v1015
    %v1092 = vpop.f32.mrb[0].mxu0
    %v1093 = vadd.f32 %v340, %v1092
    %v1094 = vpop.f32.mrb[0].mxu0
    %v1095 = vadd.f32 %v344, %v1094
    %v1096 = vpop.f32.mrb[0].mxu0
    %v1097 = vpop.f32.mrb[0].mxu0
    %1098 = vdwg.mxu0
    %v1099 = vxor.u32 %v1052, 2147483648
    %v1100 = vmul.f32 %v1099, 1.442695
    %v1101 = vpow.pop %v1100
    %v1102 = vadd.f32 %v1101, 1.0
    %v1103 = vrcp.pop %v1102
    %v1104 = vmul.f32 1.0, %v1103
    %v1105 = vxor.u32 %v1054, 2147483648
    %v1106 = vmul.f32 %v1105, 1.442695
    %v1107 = vpow.pop %v1106
    %v1108 = vadd.f32 %v1107, 1.0
    %v1109 = vrcp.pop %v1108
    %v1110 = vmul.f32 1.0, %v1109
    %v1111 = vtanh.pop %v1093
    %v1112 = vxor.u32 %v1095, 2147483648
    %v1113 = vmul.f32 %v1112, 1.442695
    %v1114 = vpow.pop %v1113
    %v1115 = vadd.f32 %v1114, 1.0
    %v1116 = vrcp.pop %v1115
    %v1117 = vmul.f32 1.0, %v1116
    %v1118 = vmul.f32 %v1110, %v762
    %v1119 = vmul.f32 %v1104, %v1111
    %v1120 = vadd.f32 %v1118, %v1119
    %v1121 = vtanh.pop %v1120
    %v1122 = vmul.f32 %v1117, %v1121
    %v1123 = vsel %vm367, %v1122, -inf
    %1124 = vmax.xlane.f32.xlu0 %v1123
    %v1125 = vpop.xlane.xlu0 %1124
    %v1126 = vsub.f32 %v1122, %v1125
    %v1127 = vmul.f32 %v1126, 1.442695
    %v1128 = vpow.pop %v1127
    %v1129 = vsel %vm367, %v1128, 0.0
    %1130 = vadd.xlane.f32.xlu0 %v1129
    %v1131 = vpop.xlane.xlu0 %1130
    %v1132 = vrcp.pop %v1131
    %v1133 = vmul.f32 %v1128, %v1132
    %v1134 = vsel %vm367, %v892, 0
    %1136 = vmatprep.subr.bf16.mxu0 %v375
    %1137 = vmatpush1.bf16.msra.mxu0 %v372
    %1138 = vmatprep.subr.bf16.mxu0 0
    %1139 = vmatpush1.bf16.msra.mxu0 0
    %1140 = vmatprep.subr.bf16.mxu0 0
    %1141 = vmatpush1.bf16.msra.mxu0 0
    %1142 = vmatprep.subr.bf16.mxu0 0
    %1143 = vmatpush1.bf16.msra.mxu0 0
    %1144 = vmatprep.subr.bf16.mxu0 0
    %1145 = vmatpush1.bf16.msra.mxu0 0
    %1146 = vmatprep.subr.bf16.mxu0 0
    %1147 = vmatpush1.bf16.msra.mxu0 0
    %1148 = vmatprep.subr.bf16.mxu0 0
    %1149 = vmatpush1.bf16.msra.mxu0 0
    %1150 = vmatprep.subr.bf16.mxu0 0
    %1151 = vmatpush1.bf16.msra.mxu0 0
    %1152 = vmatprep.subr.bf16.mxu0 0
    %1153 = vmatpush1.bf16.msra.mxu0 0
    %1154 = vmatprep.subr.bf16.mxu0 0
    %1155 = vmatpush1.bf16.msra.mxu0 0
    %1156 = vmatprep.subr.bf16.mxu0 0
    %1157 = vmatpush1.bf16.msra.mxu0 0
    %1158 = vmatprep.subr.bf16.mxu0 0
    %1159 = vmatpush1.bf16.msra.mxu0 0
    %1160 = vmatprep.subr.bf16.mxu0 0
    %1161 = vmatpush1.bf16.msra.mxu0 0
    %1162 = vmatprep.subr.bf16.mxu0 0
    %1163 = vmatpush1.bf16.msra.mxu0 0
    %1164 = vmatprep.subr.bf16.mxu0 0
    %1165 = vmatpush1.bf16.msra.mxu0 0
    %1166 = vmatprep.subr.bf16.mxu0 0
    %1167 = vmatpush1.bf16.msra.mxu0 0
    %1168 = vmatprep.mubr.bf16.mxu0 0
    %1169 = vmatmul.mubr.bf16.gmra.mrb[0].mxu0 %v1134
    %v1170 = vpop.f32.mrb[0].mxu0
    %v1171 = vadd.f32 0.0, %v1170
    %v1172 = vpop.f32.mrb[0].mxu0
    %v1173 = vadd.f32 0.0, %v1172
    %v1174 = vpop.f32.mrb[0].mxu0
    %v1175 = vpop.f32.mrb[0].mxu0
    %1176 = vdwg.mxu0
    %1177 = vmatprep.subr.bf16.mxu0 %v381
    %1178 = vmatpush1.bf16.msra.mxu0 %v378
    %1179 = vmatprep.subr.bf16.mxu0 0
    %1180 = vmatpush1.bf16.msra.mxu0 0
    %1181 = vmatprep.subr.bf16.mxu0 0
    %1182 = vmatpush1.bf16.msra.mxu0 0
    %1183 = vmatprep.subr.bf16.mxu0 0
    %1184 = vmatpush1.bf16.msra.mxu0 0
    %1185 = vmatprep.subr.bf16.mxu0 0
    %1186 = vmatpush1.bf16.msra.mxu0 0
    %1187 = vmatprep.subr.bf16.mxu0 0
    %1188 = vmatpush1.bf16.msra.mxu0 0
    %1189 = vmatprep.subr.bf16.mxu0 0
    %1190 = vmatpush1.bf16.msra.mxu0 0
    %1191 = vmatprep.subr.bf16.mxu0 0
    %1192 = vmatpush1.bf16.msra.mxu0 0
    %1193 = vmatprep.subr.bf16.mxu0 0
    %1194 = vmatpush1.bf16.msra.mxu0 0
    %1195 = vmatprep.subr.bf16.mxu0 0
    %1196 = vmatpush1.bf16.msra.mxu0 0
    %1197 = vmatprep.subr.bf16.mxu0 0
    %1198 = vmatpush1.bf16.msra.mxu0 0
    %1199 = vmatprep.subr.bf16.mxu0 0
    %1200 = vmatpush1.bf16.msra.mxu0 0
    %1201 = vmatprep.subr.bf16.mxu0 0
    %1202 = vmatpush1.bf16.msra.mxu0 0
    %1203 = vmatprep.subr.bf16.mxu0 0
    %1204 = vmatpush1.bf16.msra.mxu0 0
    %1205 = vmatprep.subr.bf16.mxu0 0
    %1206 = vmatpush1.bf16.msra.mxu0 0
    %1207 = vmatprep.subr.bf16.mxu0 0
    %1208 = vmatpush1.bf16.msra.mxu0 0
    %1209 = vmatprep.mubr.bf16.mxu0 0
    %1210 = vmatmul.mubr.bf16.gmra.mrb[0].mxu0 %v1134
    %v1211 = vpop.f32.mrb[0].mxu0
    %v1212 = vadd.f32 0.0, %v1211
    %v1213 = vpop.f32.mrb[0].mxu0
    %v1214 = vadd.f32 0.0, %v1213
    %v1215 = vpop.f32.mrb[0].mxu0
    %v1216 = vpop.f32.mrb[0].mxu0
    %1217 = vdwg.mxu0
    %v1218 = vadd.f32 %v228, %v1171
    %v1219 = vadd.f32 %v230, %v1173
    %v1220 = vadd.f32 %v269, %v1212
    %v1221 = vadd.f32 %v271, %v1214
    %v1222 = vadd.f32 %v1218, %v286
    %v1223 = vadd.f32 %v1219, %v290
    %v1224 = vadd.f32 %v1220, %v294
    %v1225 = vadd.f32 %v1221, %v298
    %v1226 = vxor.u32 %v1222, 2147483648
    %v1227 = vmul.f32 %v1226, 1.442695
    %v1228 = vpow.pop %v1227
    %v1229 = vadd.f32 %v1228, 1.0
    %v1230 = vrcp.pop %v1229
    %v1231 = vmul.f32 1.0, %v1230
    %v1232 = vxor.u32 %v1223, 2147483648
    %v1233 = vmul.f32 %v1232, 1.442695
    %v1234 = vpow.pop %v1233
    %v1235 = vadd.f32 %v1234, 1.0
    %v1236 = vrcp.pop %v1235
    %v1237 = vmul.f32 1.0, %v1236
    %v1238 = vtanh.pop %v1224
    %v1239 = vxor.u32 %v1225, 2147483648
    %v1240 = vmul.f32 %v1239, 1.442695
    %v1241 = vpow.pop %v1240
    %v1242 = vadd.f32 %v1241, 1.0
    %v1243 = vrcp.pop %v1242
    %v1244 = vmul.f32 1.0, %v1243
    %v1245 = vmul.f32 %v1237, %v889
    %v1246 = vmul.f32 %v1231, %v1238
    %v1247 = vadd.f32 %v1245, %v1246
    %v1248 = vtanh.pop %v1247
    %v1249 = vmul.f32 %v1244, %v1248
    %v1250 = vpack.c.bf16 %v1249, %v1249
    %1252 = vrot.lane.b32.xlu0 %v1007, 4
    %v1253 = vpop.permute.xlu0 %1252
    %v1256 = vsel %vm367, %v1250, %v1253
    %v1257 = vsel %vm510, %v1256, 0
    %1259 = vmatprep.subr.bf16.mxu0 %v518
    %1260 = vmatpush1.bf16.msra.mxu0 %v515
    %1261 = vmatprep.subr.bf16.mxu0 0
    %1262 = vmatpush1.bf16.msra.mxu0 0
    %1263 = vmatprep.subr.bf16.mxu0 0
    %1264 = vmatpush1.bf16.msra.mxu0 0
    %1265 = vmatprep.subr.bf16.mxu0 0
    %1266 = vmatpush1.bf16.msra.mxu0 0
    %1267 = vmatprep.subr.bf16.mxu0 0
    %1268 = vmatpush1.bf16.msra.mxu0 0
    %1269 = vmatprep.subr.bf16.mxu0 0
    %1270 = vmatpush1.bf16.msra.mxu0 0
    %1271 = vmatprep.subr.bf16.mxu0 0
    %1272 = vmatpush1.bf16.msra.mxu0 0
    %1273 = vmatprep.subr.bf16.mxu0 0
    %1274 = vmatpush1.bf16.msra.mxu0 0
    %1275 = vmatprep.subr.bf16.mxu0 0
    %1276 = vmatpush1.bf16.msra.mxu0 0
    %1277 = vmatprep.subr.bf16.mxu0 0
    %1278 = vmatpush1.bf16.msra.mxu0 0
    %1279 = vmatprep.subr.bf16.mxu0 0
    %1280 = vmatpush1.bf16.msra.mxu0 0
    %1281 = vmatprep.subr.bf16.mxu0 0
    %1282 = vmatpush1.bf16.msra.mxu0 0
    %1283 = vmatprep.subr.bf16.mxu0 0
    %1284 = vmatpush1.bf16.msra.mxu0 0
    %1285 = vmatprep.subr.bf16.mxu0 0
    %1286 = vmatpush1.bf16.msra.mxu0 0
    %1287 = vmatprep.subr.bf16.mxu0 0
    %1288 = vmatpush1.bf16.msra.mxu0 0
    %1289 = vmatprep.subr.bf16.mxu0 0
    %1290 = vmatpush1.bf16.msra.mxu0 0
    %1291 = vmatprep.mubr.bf16.mxu0 0
    %1292 = vmatmul.mubr.bf16.gmra.mrb[0].mxu0 %v1257
    %v1293 = vpop.f32.mrb[0].mxu0
    %v1294 = vadd.f32 %v309, %v1293
    %v1295 = vpop.f32.mrb[0].mxu0
    %v1296 = vadd.f32 %v313, %v1295
    %v1297 = vpop.f32.mrb[0].mxu0
    %v1298 = vpop.f32.mrb[0].mxu0
    %1299 = vdwg.mxu0
    %1300 = vmatprep.subr.bf16.mxu0 %v524
    %1301 = vmatpush1.bf16.msra.mxu0 %v521
    %1302 = vmatprep.subr.bf16.mxu0 0
    %1303 = vmatpush1.bf16.msra.mxu0 0
    %1304 = vmatprep.subr.bf16.mxu0 0
    %1305 = vmatpush1.bf16.msra.mxu0 0
    %1306 = vmatprep.subr.bf16.mxu0 0
    %1307 = vmatpush1.bf16.msra.mxu0 0
    %1308 = vmatprep.subr.bf16.mxu0 0
    %1309 = vmatpush1.bf16.msra.mxu0 0
    %1310 = vmatprep.subr.bf16.mxu0 0
    %1311 = vmatpush1.bf16.msra.mxu0 0
    %1312 = vmatprep.subr.bf16.mxu0 0
    %1313 = vmatpush1.bf16.msra.mxu0 0
    %1314 = vmatprep.subr.bf16.mxu0 0
    %1315 = vmatpush1.bf16.msra.mxu0 0
    %1316 = vmatprep.subr.bf16.mxu0 0
    %1317 = vmatpush1.bf16.msra.mxu0 0
    %1318 = vmatprep.subr.bf16.mxu0 0
    %1319 = vmatpush1.bf16.msra.mxu0 0
    %1320 = vmatprep.subr.bf16.mxu0 0
    %1321 = vmatpush1.bf16.msra.mxu0 0
    %1322 = vmatprep.subr.bf16.mxu0 0
    %1323 = vmatpush1.bf16.msra.mxu0 0
    %1324 = vmatprep.subr.bf16.mxu0 0
    %1325 = vmatpush1.bf16.msra.mxu0 0
    %1326 = vmatprep.subr.bf16.mxu0 0
    %1327 = vmatpush1.bf16.msra.mxu0 0
    %1328 = vmatprep.subr.bf16.mxu0 0
    %1329 = vmatpush1.bf16.msra.mxu0 0
    %1330 = vmatprep.subr.bf16.mxu0 0
    %1331 = vmatpush1.bf16.msra.mxu0 0
    %1332 = vmatprep.mubr.bf16.mxu0 0
    %1333 = vmatmul.mubr.bf16.gmra.mrb[0].mxu0 %v1257
    %v1334 = vpop.f32.mrb[0].mxu0
    %v1335 = vadd.f32 %v317, %v1334
    %v1336 = vpop.f32.mrb[0].mxu0
    %v1337 = vadd.f32 %v321, %v1336
    %v1338 = vpop.f32.mrb[0].mxu0
    %v1339 = vpop.f32.mrb[0].mxu0
    %1340 = vdwg.mxu0
    %v1341 = vxor.u32 %v1294, 2147483648
    %v1342 = vmul.f32 %v1341, 1.442695
    %v1343 = vpow.pop %v1342
    %v1344 = vadd.f32 %v1343, 1.0
    %v1345 = vrcp.pop %v1344
    %v1346 = vmul.f32 1.0, %v1345
    %v1347 = vxor.u32 %v1296, 2147483648
    %v1348 = vmul.f32 %v1347, 1.442695
    %v1349 = vpow.pop %v1348
    %v1350 = vadd.f32 %v1349, 1.0
    %v1351 = vrcp.pop %v1350
    %v1352 = vmul.f32 1.0, %v1351
    %v1353 = vtanh.pop %v1335
    %v1354 = vxor.u32 %v1337, 2147483648
    %v1355 = vmul.f32 %v1354, 1.442695
    %v1356 = vpow.pop %v1355
    %v1357 = vadd.f32 %v1356, 1.0
    %v1358 = vrcp.pop %v1357
    %v1359 = vmul.f32 1.0, %v1358
    %v1360 = vmul.f32 %v1352, %v1004
    %v1361 = vmul.f32 %v1346, %v1353
    %v1362 = vadd.f32 %v1360, %v1361
    %v1363 = vtanh.pop %v1362
    %v1364 = vmul.f32 %v1359, %v1363
    %v1365 = vpack.c.bf16 %v1364, %v1364
    %v1366 = vpack.c.bf16 %v1122, %v1122
    %1368 = vrot.lane.b32.xlu0 %v1366, 4
    %v1369 = vpop.permute.xlu0 %1368
    %v1372 = vsel %vm367, %v1365, %v1369
    %v1373 = vsel %vm510, %v1372, 0
    %1375 = vmatprep.subr.bf16.mxu0 %v651
    %1376 = vmatpush1.bf16.msra.mxu0 %v648
    %1377 = vmatprep.subr.bf16.mxu0 0
    %1378 = vmatpush1.bf16.msra.mxu0 0
    %1379 = vmatprep.subr.bf16.mxu0 0
    %1380 = vmatpush1.bf16.msra.mxu0 0
    %1381 = vmatprep.subr.bf16.mxu0 0
    %1382 = vmatpush1.bf16.msra.mxu0 0
    %1383 = vmatprep.subr.bf16.mxu0 0
    %1384 = vmatpush1.bf16.msra.mxu0 0
    %1385 = vmatprep.subr.bf16.mxu0 0
    %1386 = vmatpush1.bf16.msra.mxu0 0
    %1387 = vmatprep.subr.bf16.mxu0 0
    %1388 = vmatpush1.bf16.msra.mxu0 0
    %1389 = vmatprep.subr.bf16.mxu0 0
    %1390 = vmatpush1.bf16.msra.mxu0 0
    %1391 = vmatprep.subr.bf16.mxu0 0
    %1392 = vmatpush1.bf16.msra.mxu0 0
    %1393 = vmatprep.subr.bf16.mxu0 0
    %1394 = vmatpush1.bf16.msra.mxu0 0
    %1395 = vmatprep.subr.bf16.mxu0 0
    %1396 = vmatpush1.bf16.msra.mxu0 0
    %1397 = vmatprep.subr.bf16.mxu0 0
    %1398 = vmatpush1.bf16.msra.mxu0 0
    %1399 = vmatprep.subr.bf16.mxu0 0
    %1400 = vmatpush1.bf16.msra.mxu0 0
    %1401 = vmatprep.subr.bf16.mxu0 0
    %1402 = vmatpush1.bf16.msra.mxu0 0
    %1403 = vmatprep.subr.bf16.mxu0 0
    %1404 = vmatpush1.bf16.msra.mxu0 0
    %1405 = vmatprep.subr.bf16.mxu0 0
    %1406 = vmatpush1.bf16.msra.mxu0 0
    %1407 = vmatprep.mubr.bf16.mxu0 0
    %1408 = vmatmul.mubr.bf16.gmra.mrb[0].mxu0 %v1373
    %v1409 = vpop.f32.mrb[0].mxu0
    %v1410 = vadd.f32 %v332, %v1409
    %v1411 = vpop.f32.mrb[0].mxu0
    %v1412 = vadd.f32 %v336, %v1411
    %v1413 = vpop.f32.mrb[0].mxu0
    %v1414 = vpop.f32.mrb[0].mxu0
    %1415 = vdwg.mxu0
    %1416 = vmatprep.subr.bf16.mxu0 %v657
    %1417 = vmatpush1.bf16.msra.mxu0 %v654
    %1418 = vmatprep.subr.bf16.mxu0 0
    %1419 = vmatpush1.bf16.msra.mxu0 0
    %1420 = vmatprep.subr.bf16.mxu0 0
    %1421 = vmatpush1.bf16.msra.mxu0 0
    %1422 = vmatprep.subr.bf16.mxu0 0
    %1423 = vmatpush1.bf16.msra.mxu0 0
    %1424 = vmatprep.subr.bf16.mxu0 0
    %1425 = vmatpush1.bf16.msra.mxu0 0
    %1426 = vmatprep.subr.bf16.mxu0 0
    %1427 = vmatpush1.bf16.msra.mxu0 0
    %1428 = vmatprep.subr.bf16.mxu0 0
    %1429 = vmatpush1.bf16.msra.mxu0 0
    %1430 = vmatprep.subr.bf16.mxu0 0
    %1431 = vmatpush1.bf16.msra.mxu0 0
    %1432 = vmatprep.subr.bf16.mxu0 0
    %1433 = vmatpush1.bf16.msra.mxu0 0
    %1434 = vmatprep.subr.bf16.mxu0 0
    %1435 = vmatpush1.bf16.msra.mxu0 0
    %1436 = vmatprep.subr.bf16.mxu0 0
    %1437 = vmatpush1.bf16.msra.mxu0 0
    %1438 = vmatprep.subr.bf16.mxu0 0
    %1439 = vmatpush1.bf16.msra.mxu0 0
    %1440 = vmatprep.subr.bf16.mxu0 0
    %1441 = vmatpush1.bf16.msra.mxu0 0
    %1442 = vmatprep.subr.bf16.mxu0 0
    %1443 = vmatpush1.bf16.msra.mxu0 0
    %1444 = vmatprep.subr.bf16.mxu0 0
    %1445 = vmatpush1.bf16.msra.mxu0 0
    %1446 = vmatprep.subr.bf16.mxu0 0
    %1447 = vmatpush1.bf16.msra.mxu0 0
    %1448 = vmatprep.mubr.bf16.mxu0 0
    %1449 = vmatmul.mubr.bf16.gmra.mrb[0].mxu0 %v1373
    %v1450 = vpop.f32.mrb[0].mxu0
    %v1451 = vadd.f32 %v340, %v1450
    %v1452 = vpop.f32.mrb[0].mxu0
    %v1453 = vadd.f32 %v344, %v1452
    %v1454 = vpop.f32.mrb[0].mxu0
    %v1455 = vpop.f32.mrb[0].mxu0
    %1456 = vdwg.mxu0
    %v1457 = vxor.u32 %v1410, 2147483648
    %v1458 = vmul.f32 %v1457, 1.442695
    %v1459 = vpow.pop %v1458
    %v1460 = vadd.f32 %v1459, 1.0
    %v1461 = vrcp.pop %v1460
    %v1462 = vmul.f32 1.0, %v1461
    %v1463 = vxor.u32 %v1412, 2147483648
    %v1464 = vmul.f32 %v1463, 1.442695
    %v1465 = vpow.pop %v1464
    %v1466 = vadd.f32 %v1465, 1.0
    %v1467 = vrcp.pop %v1466
    %v1468 = vmul.f32 1.0, %v1467
    %v1469 = vtanh.pop %v1451
    %v1470 = vxor.u32 %v1453, 2147483648
    %v1471 = vmul.f32 %v1470, 1.442695
    %v1472 = vpow.pop %v1471
    %v1473 = vadd.f32 %v1472, 1.0
    %v1474 = vrcp.pop %v1473
    %v1475 = vmul.f32 1.0, %v1474
    %v1476 = vmul.f32 %v1468, %v1120
    %v1477 = vmul.f32 %v1462, %v1469
    %v1478 = vadd.f32 %v1476, %v1477
    %v1479 = vtanh.pop %v1478
    %v1480 = vmul.f32 %v1475, %v1479
    %v1481 = vsel %vm367, %v1480, -inf
    %1482 = vmax.xlane.f32.xlu0 %v1481
    %v1483 = vpop.xlane.xlu0 %1482
    %v1484 = vsub.f32 %v1480, %v1483
    %v1485 = vmul.f32 %v1484, 1.442695
    %v1486 = vpow.pop %v1485
    %v1487 = vsel %vm367, %v1486, 0.0
    %1488 = vadd.xlane.f32.xlu0 %v1487
    %v1489 = vpop.xlane.xlu0 %1488
    %v1490 = vrcp.pop %v1489
    %v1491 = vmul.f32 %v1486, %v1490
    %v1492 = vld [vmem:[#allocation5] sm:$0xff]
    %v1493 = vsel %vm367, %v775, -inf
    %1494 = vmax.xlane.f32.xlu0 %v1493
    %v1495 = vpop.xlane.xlu0 %1494
    %v1496 = vsub.f32 %v775, %v1495
    %v1497 = vmul.f32 %v1496, 1.442695
    %v1498 = vpow.pop %v1497
    %v1499 = vsel %vm367, %v1498, 0.0
    %1500 = vadd.xlane.f32.xlu0 %v1499
    %v1501 = vpop.xlane.xlu0 %1500
    %v1502 = vrcp.pop %v1501
    %v1503 = vmul.f32 %v1498, %v1502
    %v1504 = vmul.f32 %v775, %v775
    %v1505 = vsel %vm367, %v1504, 0.0
    %1506 = vadd.xlane.f32.xlu0 %v1505
    %v1507 = vpop.xlane.xlu0 %1506
    %v1508 = vsub.f32 %v1507, %v1507
    %v1509 = vmul.f32 %v1508, 1.442695
    %v1510 = vpow.pop %v1509
    %v1511 = vrcp.pop %v1510
    %v1512 = vmul.f32 %v1510, %v1511
    %v1513 = vmul.f32 %v1512, %v1492
    %v1514 = vpack.c.bf16 %v1513, %v1513
    %v1547 = vunpack.c.l.b16 %v108
    %v1548 = vunpack.c.h.b16 %v108
    %v1549 = vunpack.c.l.b16 %v109
    %v1550 = vunpack.c.h.b16 %v109
    %v1551 = vunpack.c.l.b16 %v110
    %v1552 = vunpack.c.h.b16 %v110
    %v1553 = vunpack.c.l.b16 %v111
    %v1554 = vunpack.c.h.b16 %v111
    %v1555 = vunpack.c.l.b16 %v112
    %v1556 = vunpack.c.h.b16 %v112
    %v1557 = vunpack.c.l.b16 %v113
    %v1558 = vunpack.c.h.b16 %v113
    %v1559 = vunpack.c.l.b16 %v114
    %v1560 = vunpack.c.h.b16 %v114
    %v1561 = vunpack.c.l.b16 %v115
    %v1562 = vunpack.c.h.b16 %v115
    %v1563 = vunpack.c.l.b16 %v116
    %v1564 = vunpack.c.h.b16 %v116
    %v1565 = vunpack.c.l.b16 %v117
    %v1566 = vunpack.c.h.b16 %v117
    %v1567 = vunpack.c.l.b16 %v118
    %v1568 = vunpack.c.h.b16 %v118
    %v1569 = vunpack.c.l.b16 %v119
    %v1570 = vunpack.c.h.b16 %v119
    %v1571 = vunpack.c.l.b16 %v120
    %v1572 = vunpack.c.h.b16 %v120
    %v1573 = vunpack.c.l.b16 %v121
    %v1574 = vunpack.c.h.b16 %v121
    %v1575 = vunpack.c.l.b16 %v122
    %v1576 = vunpack.c.h.b16 %v122
    %v1577 = vunpack.c.l.b16 %v123
    %v1578 = vunpack.c.h.b16 %v123
    %v1579 = vunpack.c.l.b16 %v124
    %v1580 = vunpack.c.h.b16 %v124
    %v1581 = vunpack.c.l.b16 %v125
    %v1582 = vunpack.c.h.b16 %v125
    %v1583 = vunpack.c.l.b16 %v126
    %v1584 = vunpack.c.h.b16 %v126
    %v1585 = vunpack.c.l.b16 %v127
    %v1586 = vunpack.c.h.b16 %v127
    %v1587 = vunpack.c.l.b16 %v128
    %v1588 = vunpack.c.h.b16 %v128
    %v1589 = vunpack.c.l.b16 %v129
    %v1590 = vunpack.c.h.b16 %v129
    %v1591 = vunpack.c.l.b16 %v130
    %v1592 = vunpack.c.h.b16 %v130
    %v1593 = vunpack.c.l.b16 %v131
    %v1594 = vunpack.c.h.b16 %v131
    %v1595 = vunpack.c.l.b16 %v132
    %v1596 = vunpack.c.h.b16 %v132
    %v1597 = vunpack.c.l.b16 %v133
    %v1598 = vunpack.c.h.b16 %v133
    %v1599 = vunpack.c.l.b16 %v134
    %v1600 = vunpack.c.h.b16 %v134
    %v1601 = vunpack.c.l.b16 %v135
    %v1602 = vunpack.c.h.b16 %v135
    %v1603 = vunpack.c.l.b16 %v136
    %v1604 = vunpack.c.h.b16 %v136
    %v1605 = vunpack.c.l.b16 %v137
    %v1606 = vunpack.c.h.b16 %v137
    %v1607 = vunpack.c.l.b16 %v138
    %v1608 = vunpack.c.h.b16 %v138
    %v1609 = vunpack.c.l.b16 %v139
    %v1610 = vunpack.c.h.b16 %v139
    %v1611 = vpack.c.b16 %v1551, %v1547
    %v1612 = vpack.c.b16 %v1552, %v1548
    %v1613 = vpack.c.b16 %v1553, %v1549
    %v1614 = vpack.c.b16 %v1554, %v1550
    %v1615 = vpack.c.b16 %v1559, %v1555
    %v1616 = vpack.c.b16 %v1560, %v1556
    %v1617 = vpack.c.b16 %v1561, %v1557
    %v1618 = vpack.c.b16 %v1562, %v1558
    %v1619 = vpack.c.b16 %v1567, %v1563
    %v1620 = vpack.c.b16 %v1568, %v1564
    %v1621 = vpack.c.b16 %v1569, %v1565
    %v1622 = vpack.c.b16 %v1570, %v1566
    %v1623 = vpack.c.b16 %v1575, %v1571
    %v1624 = vpack.c.b16 %v1576, %v1572
    %v1625 = vpack.c.b16 %v1577, %v1573
    %v1626 = vpack.c.b16 %v1578, %v1574
    %v1627 = vpack.c.b16 %v1583, %v1579
    %v1628 = vpack.c.b16 %v1584, %v1580
    %v1629 = vpack.c.b16 %v1585, %v1581
    %v1630 = vpack.c.b16 %v1586, %v1582
    %v1631 = vpack.c.b16 %v1591, %v1587
    %v1632 = vpack.c.b16 %v1592, %v1588
    %v1633 = vpack.c.b16 %v1593, %v1589
    %v1634 = vpack.c.b16 %v1594, %v1590
    %v1635 = vpack.c.b16 %v1599, %v1595
    %v1636 = vpack.c.b16 %v1600, %v1596
    %v1637 = vpack.c.b16 %v1601, %v1597
    %v1638 = vpack.c.b16 %v1602, %v1598
    %v1639 = vpack.c.b16 %v1607, %v1603
    %v1640 = vpack.c.b16 %v1608, %v1604
    %v1641 = vpack.c.b16 %v1609, %v1605
    %v1642 = vpack.c.b16 %v1610, %v1606
    %1675 = vmatprep.subr.bf16.mxu0 %v1612
    %1676 = vmatpush1.bf16.msra.mxu0 %v1611
    %1677 = vmatprep.subr.bf16.mxu0 %v1616
    %1678 = vmatpush1.bf16.msra.mxu0 %v1615
    %1679 = vmatprep.subr.bf16.mxu0 %v1620
    %1680 = vmatpush1.bf16.msra.mxu0 %v1619
    %1681 = vmatprep.subr.bf16.mxu0 %v1624
    %1682 = vmatpush1.bf16.msra.mxu0 %v1623
    %1683 = vmatprep.subr.bf16.mxu0 %v1628
    %1684 = vmatpush1.bf16.msra.mxu0 %v1627
    %1685 = vmatprep.subr.bf16.mxu0 %v1632
    %1686 = vmatpush1.bf16.msra.mxu0 %v1631
    %1687 = vmatprep.subr.bf16.mxu0 %v1636
    %1688 = vmatpush1.bf16.msra.mxu0 %v1635
    %1689 = vmatprep.subr.bf16.mxu0 %v1640
    %1690 = vmatpush1.bf16.msra.mxu0 %v1639
    %1691 = vmatprep.subr.bf16.mxu0 0
    %1692 = vmatpush1.bf16.msra.mxu0 0
    %1693 = vmatprep.subr.bf16.mxu0 0
    %1694 = vmatpush1.bf16.msra.mxu0 0
    %1695 = vmatprep.subr.bf16.mxu0 0
    %1696 = vmatpush1.bf16.msra.mxu0 0
    %1697 = vmatprep.subr.bf16.mxu0 0
    %1698 = vmatpush1.bf16.msra.mxu0 0
    %1699 = vmatprep.subr.bf16.mxu0 0
    %1700 = vmatpush1.bf16.msra.mxu0 0
    %1701 = vmatprep.subr.bf16.mxu0 0
    %1702 = vmatpush1.bf16.msra.mxu0 0
    %1703 = vmatprep.subr.bf16.mxu0 0
    %1704 = vmatpush1.bf16.msra.mxu0 0
    %1705 = vmatprep.subr.bf16.mxu0 0
    %1706 = vmatpush1.bf16.msra.mxu0 0
    %1707 = vmatprep.mubr.bf16.mxu0 0
    %1708 = vmatmul.mubr.bf16.gmra.mrb[0].mxu0 %v1514
    %v1709 = vpop.f32.mrb[0].mxu0
    %v1710 = vadd.f32 0.0, %v1709
    %v1711 = vpop.f32.mrb[0].mxu0
    %v1712 = vadd.f32 0.0, %v1711
    %v1713 = vpop.f32.mrb[0].mxu0
    %v1714 = vpop.f32.mrb[0].mxu0
    %1715 = vdwg.mxu0
    %1716 = vmatprep.subr.bf16.mxu0 %v1614
    %1717 = vmatpush1.bf16.msra.mxu0 %v1613
    %1718 = vmatprep.subr.bf16.mxu0 %v1618
    %1719 = vmatpush1.bf16.msra.mxu0 %v1617
    %1720 = vmatprep.subr.bf16.mxu0 %v1622
    %1721 = vmatpush1.bf16.msra.mxu0 %v1621
    %1722 = vmatprep.subr.bf16.mxu0 %v1626
    %1723 = vmatpush1.bf16.msra.mxu0 %v1625
    %1724 = vmatprep.subr.bf16.mxu0 %v1630
    %1725 = vmatpush1.bf16.msra.mxu0 %v1629
    %1726 = vmatprep.subr.bf16.mxu0 %v1634
    %1727 = vmatpush1.bf16.msra.mxu0 %v1633
    %1728 = vmatprep.subr.bf16.mxu0 %v1638
    %1729 = vmatpush1.bf16.msra.mxu0 %v1637
    %1730 = vmatprep.subr.bf16.mxu0 %v1642
    %1731 = vmatpush1.bf16.msra.mxu0 %v1641
    %1732 = vmatprep.subr.bf16.mxu0 0
    %1733 = vmatpush1.bf16.msra.mxu0 0
    %1734 = vmatprep.subr.bf16.mxu0 0
    %1735 = vmatpush1.bf16.msra.mxu0 0
    %1736 = vmatprep.subr.bf16.mxu0 0
    %1737 = vmatpush1.bf16.msra.mxu0 0
    %1738 = vmatprep.subr.bf16.mxu0 0
    %1739 = vmatpush1.bf16.msra.mxu0 0
    %1740 = vmatprep.subr.bf16.mxu0 0
    %1741 = vmatpush1.bf16.msra.mxu0 0
    %1742 = vmatprep.subr.bf16.mxu0 0
    %1743 = vmatpush1.bf16.msra.mxu0 0
    %1744 = vmatprep.subr.bf16.mxu0 0
    %1745 = vmatpush1.bf16.msra.mxu0 0
    %1746 = vmatprep.subr.bf16.mxu0 0
    %1747 = vmatpush1.bf16.msra.mxu0 0
    %1748 = vmatprep.mubr.bf16.mxu0 0
    %1749 = vmatmul.mubr.bf16.gmra.mrb[0].mxu0 %v1514
    %v1750 = vpop.f32.mrb[0].mxu0
    %v1751 = vadd.f32 0.0, %v1750
    %v1752 = vpop.f32.mrb[0].mxu0
    %v1753 = vadd.f32 0.0, %v1752
    %v1754 = vpop.f32.mrb[0].mxu0
    %v1755 = vpop.f32.mrb[0].mxu0
    %1756 = vdwg.mxu0
    %1758 = vset.pattern.permute.xlu0 0
    %1759 = vperm.xlu0 %1758, %v1503
    %v1760 = vpop.permute.xlu0 %1759
    %v1762 = vmul.f32 %v1760, %v1710
    %1763 = vset.pattern.permute.xlu0 1
    %1764 = vperm.xlu0 %1763, %v1503
    %v1765 = vpop.permute.xlu0 %1764
    %v1767 = vmul.f32 %v1765, %v1712
    %v1768 = vadd.f32 %v1762, %v1767
    %1769 = vset.pattern.permute.xlu0 2
    %1770 = vperm.xlu0 %1769, %v1503
    %v1771 = vpop.permute.xlu0 %1770
    %v1773 = vmul.f32 %v1771, %v1751
    %v1774 = vadd.f32 %v1768, %v1773
    %1775 = vset.pattern.permute.xlu0 3
    %1776 = vperm.xlu0 %1775, %v1503
    %v1777 = vpop.permute.xlu0 %1776
    %v1779 = vmul.f32 %v1777, %v1753
    %v1780 = vadd.f32 %v1774, %v1779
    %v1781 = vsel %vm367, %v1133, -inf
    %1782 = vmax.xlane.f32.xlu0 %v1781
    %v1783 = vpop.xlane.xlu0 %1782
    %v1784 = vsub.f32 %v1133, %v1783
    %v1785 = vmul.f32 %v1784, 1.442695
    %v1786 = vpow.pop %v1785
    %v1787 = vsel %vm367, %v1786, 0.0
    %1788 = vadd.xlane.f32.xlu0 %v1787
    %v1789 = vpop.xlane.xlu0 %1788
    %v1790 = vrcp.pop %v1789
    %v1791 = vmul.f32 %v1786, %v1790
    %v1792 = vmul.f32 %v775, %v1133
    %v1793 = vsel %vm367, %v1792, 0.0
    %1794 = vadd.xlane.f32.xlu0 %v1793
    %v1795 = vpop.xlane.xlu0 %1794
    %v1796 = vmul.f32 %v1133, %v1133
    %v1797 = vsel %vm367, %v1796, 0.0
    %1798 = vadd.xlane.f32.xlu0 %v1797
    %v1799 = vpop.xlane.xlu0 %1798
    %v1800 = vmax.f32 %v1795, %v1799
    %v1801 = vsub.f32 %v1795, %v1800
    %v1802 = vmul.f32 %v1801, 1.442695
    %v1803 = vpow.pop %v1802
    %v1804 = vsub.f32 %v1799, %v1800
    %v1805 = vmul.f32 %v1804, 1.442695
    %v1806 = vpow.pop %v1805
    %v1807 = vadd.f32 %v1803, %v1806
    %v1808 = vrcp.pop %v1807
    %v1809 = vmul.f32 %v1803, %v1808
    %v1810 = vmul.f32 %v1809, %v1492
    %v1811 = vmul.f32 %v1806, %v1808
    %v1812 = vmul.f32 %v1811, %v1780
    %v1813 = vadd.f32 %v1810, %v1812
    %v1814 = vpack.c.bf16 %v1813, %v1813
    %1815 = vmatprep.subr.bf16.mxu0 %v1612
    %1816 = vmatpush1.bf16.msra.mxu0 %v1611
    %1817 = vmatprep.subr.bf16.mxu0 %v1616
    %1818 = vmatpush1.bf16.msra.mxu0 %v1615
    %1819 = vmatprep.subr.bf16.mxu0 %v1620
    %1820 = vmatpush1.bf16.msra.mxu0 %v1619
    %1821 = vmatprep.subr.bf16.mxu0 %v1624
    %1822 = vmatpush1.bf16.msra.mxu0 %v1623
    %1823 = vmatprep.subr.bf16.mxu0 %v1628
    %1824 = vmatpush1.bf16.msra.mxu0 %v1627
    %1825 = vmatprep.subr.bf16.mxu0 %v1632
    %1826 = vmatpush1.bf16.msra.mxu0 %v1631
    %1827 = vmatprep.subr.bf16.mxu0 %v1636
    %1828 = vmatpush1.bf16.msra.mxu0 %v1635
    %1829 = vmatprep.subr.bf16.mxu0 %v1640
    %1830 = vmatpush1.bf16.msra.mxu0 %v1639
    %1831 = vmatprep.subr.bf16.mxu0 0
    %1832 = vmatpush1.bf16.msra.mxu0 0
    %1833 = vmatprep.subr.bf16.mxu0 0
    %1834 = vmatpush1.bf16.msra.mxu0 0
    %1835 = vmatprep.subr.bf16.mxu0 0
    %1836 = vmatpush1.bf16.msra.mxu0 0
    %1837 = vmatprep.subr.bf16.mxu0 0
    %1838 = vmatpush1.bf16.msra.mxu0 0
    %1839 = vmatprep.subr.bf16.mxu0 0
    %1840 = vmatpush1.bf16.msra.mxu0 0
    %1841 = vmatprep.subr.bf16.mxu0 0
    %1842 = vmatpush1.bf16.msra.mxu0 0
    %1843 = vmatprep.subr.bf16.mxu0 0
    %1844 = vmatpush1.bf16.msra.mxu0 0
    %1845 = vmatprep.subr.bf16.mxu0 0
    %1846 = vmatpush1.bf16.msra.mxu0 0
    %1847 = vmatprep.mubr.bf16.mxu0 0
    %1848 = vmatmul.mubr.bf16.gmra.mrb[0].mxu0 %v1814
    %v1849 = vpop.f32.mrb[0].mxu0
    %v1850 = vadd.f32 0.0, %v1849
    %v1851 = vpop.f32.mrb[0].mxu0
    %v1852 = vadd.f32 0.0, %v1851
    %v1853 = vpop.f32.mrb[0].mxu0
    %v1854 = vpop.f32.mrb[0].mxu0
    %1855 = vdwg.mxu0
    %1856 = vmatprep.subr.bf16.mxu0 %v1614
    %1857 = vmatpush1.bf16.msra.mxu0 %v1613
    %1858 = vmatprep.subr.bf16.mxu0 %v1618
    %1859 = vmatpush1.bf16.msra.mxu0 %v1617
    %1860 = vmatprep.subr.bf16.mxu0 %v1622
    %1861 = vmatpush1.bf16.msra.mxu0 %v1621
    %1862 = vmatprep.subr.bf16.mxu0 %v1626
    %1863 = vmatpush1.bf16.msra.mxu0 %v1625
    %1864 = vmatprep.subr.bf16.mxu0 %v1630
    %1865 = vmatpush1.bf16.msra.mxu0 %v1629
    %1866 = vmatprep.subr.bf16.mxu0 %v1634
    %1867 = vmatpush1.bf16.msra.mxu0 %v1633
    %1868 = vmatprep.subr.bf16.mxu0 %v1638
    %1869 = vmatpush1.bf16.msra.mxu0 %v1637
    %1870 = vmatprep.subr.bf16.mxu0 %v1642
    %1871 = vmatpush1.bf16.msra.mxu0 %v1641
    %1872 = vmatprep.subr.bf16.mxu0 0
    %1873 = vmatpush1.bf16.msra.mxu0 0
    %1874 = vmatprep.subr.bf16.mxu0 0
    %1875 = vmatpush1.bf16.msra.mxu0 0
    %1876 = vmatprep.subr.bf16.mxu0 0
    %1877 = vmatpush1.bf16.msra.mxu0 0
    %1878 = vmatprep.subr.bf16.mxu0 0
    %1879 = vmatpush1.bf16.msra.mxu0 0
    %1880 = vmatprep.subr.bf16.mxu0 0
    %1881 = vmatpush1.bf16.msra.mxu0 0
    %1882 = vmatprep.subr.bf16.mxu0 0
    %1883 = vmatpush1.bf16.msra.mxu0 0
    %1884 = vmatprep.subr.bf16.mxu0 0
    %1885 = vmatpush1.bf16.msra.mxu0 0
    %1886 = vmatprep.subr.bf16.mxu0 0
    %1887 = vmatpush1.bf16.msra.mxu0 0
    %1888 = vmatprep.mubr.bf16.mxu0 0
    %1889 = vmatmul.mubr.bf16.gmra.mrb[0].mxu0 %v1814
    %v1890 = vpop.f32.mrb[0].mxu0
    %v1891 = vadd.f32 0.0, %v1890
    %v1892 = vpop.f32.mrb[0].mxu0
    %v1893 = vadd.f32 0.0, %v1892
    %v1894 = vpop.f32.mrb[0].mxu0
    %v1895 = vpop.f32.mrb[0].mxu0
    %1896 = vdwg.mxu0
    %1898 = vset.pattern.permute.xlu0 0
    %1899 = vperm.xlu0 %1898, %v1791
    %v1900 = vpop.permute.xlu0 %1899
    %v1902 = vmul.f32 %v1900, %v1850
    %1903 = vset.pattern.permute.xlu0 1
    %1904 = vperm.xlu0 %1903, %v1791
    %v1905 = vpop.permute.xlu0 %1904
    %v1907 = vmul.f32 %v1905, %v1852
    %v1908 = vadd.f32 %v1902, %v1907
    %1909 = vset.pattern.permute.xlu0 2
    %1910 = vperm.xlu0 %1909, %v1791
    %v1911 = vpop.permute.xlu0 %1910
    %v1913 = vmul.f32 %v1911, %v1891
    %v1914 = vadd.f32 %v1908, %v1913
    %1915 = vset.pattern.permute.xlu0 3
    %1916 = vperm.xlu0 %1915, %v1791
    %v1917 = vpop.permute.xlu0 %1916
    %v1919 = vmul.f32 %v1917, %v1893
    %v1920 = vadd.f32 %v1914, %v1919
    %v1921 = vsel %vm367, %v1491, -inf
    %1922 = vmax.xlane.f32.xlu0 %v1921
    %v1923 = vpop.xlane.xlu0 %1922
    %v1924 = vsub.f32 %v1491, %v1923
    %v1925 = vmul.f32 %v1924, 1.442695
    %v1926 = vpow.pop %v1925
    %v1927 = vsel %vm367, %v1926, 0.0
    %1928 = vadd.xlane.f32.xlu0 %v1927
    %v1929 = vpop.xlane.xlu0 %1928
    %v1930 = vrcp.pop %v1929
    %v1931 = vmul.f32 %v1926, %v1930
    %v1932 = vmul.f32 %v775, %v1491
    %v1933 = vsel %vm367, %v1932, 0.0
    %1934 = vadd.xlane.f32.xlu0 %v1933
    %v1935 = vpop.xlane.xlu0 %1934
    %v1936 = vmul.f32 %v1133, %v1491
    %v1937 = vsel %vm367, %v1936, 0.0
    %1938 = vadd.xlane.f32.xlu0 %v1937
    %v1939 = vpop.xlane.xlu0 %1938
    %v1940 = vmul.f32 %v1491, %v1491
    %v1941 = vsel %vm367, %v1940, 0.0
    %1942 = vadd.xlane.f32.xlu0 %v1941
    %v1943 = vpop.xlane.xlu0 %1942
    %v1944 = vmax.f32 %v1935, %v1939
    %v1945 = vmax.f32 %v1944, %v1943
    %v1946 = vsub.f32 %v1935, %v1945
    %v1947 = vmul.f32 %v1946, 1.442695
    %v1948 = vpow.pop %v1947
    %v1949 = vsub.f32 %v1939, %v1945
    %v1950 = vmul.f32 %v1949, 1.442695
    %v1951 = vpow.pop %v1950
    %v1952 = vsub.f32 %v1943, %v1945
    %v1953 = vmul.f32 %v1952, 1.442695
    %v1954 = vpow.pop %v1953
    %v1955 = vadd.f32 %v1948, %v1951
    %v1956 = vadd.f32 %v1955, %v1954
    %v1957 = vrcp.pop %v1956
    %v1958 = vmul.f32 %v1948, %v1957
    %v1959 = vmul.f32 %v1958, %v1492
    %v1960 = vmul.f32 %v1951, %v1957
    %v1961 = vmul.f32 %v1960, %v1780
    %v1962 = vadd.f32 %v1959, %v1961
    %v1963 = vmul.f32 %v1954, %v1957
    %v1964 = vmul.f32 %v1963, %v1920
    %v1965 = vadd.f32 %v1962, %v1964
    %v1966 = vpack.c.bf16 %v1965, %v1965
    %1967 = vmatprep.subr.bf16.mxu0 %v1612
    %1968 = vmatpush1.bf16.msra.mxu0 %v1611
    %1969 = vmatprep.subr.bf16.mxu0 %v1616
    %1970 = vmatpush1.bf16.msra.mxu0 %v1615
    %1971 = vmatprep.subr.bf16.mxu0 %v1620
    %1972 = vmatpush1.bf16.msra.mxu0 %v1619
    %1973 = vmatprep.subr.bf16.mxu0 %v1624
    %1974 = vmatpush1.bf16.msra.mxu0 %v1623
    %1975 = vmatprep.subr.bf16.mxu0 %v1628
    %1976 = vmatpush1.bf16.msra.mxu0 %v1627
    %1977 = vmatprep.subr.bf16.mxu0 %v1632
    %1978 = vmatpush1.bf16.msra.mxu0 %v1631
    %1979 = vmatprep.subr.bf16.mxu0 %v1636
    %1980 = vmatpush1.bf16.msra.mxu0 %v1635
    %1981 = vmatprep.subr.bf16.mxu0 %v1640
    %1982 = vmatpush1.bf16.msra.mxu0 %v1639
    %1983 = vmatprep.subr.bf16.mxu0 0
    %1984 = vmatpush1.bf16.msra.mxu0 0
    %1985 = vmatprep.subr.bf16.mxu0 0
    %1986 = vmatpush1.bf16.msra.mxu0 0
    %1987 = vmatprep.subr.bf16.mxu0 0
    %1988 = vmatpush1.bf16.msra.mxu0 0
    %1989 = vmatprep.subr.bf16.mxu0 0
    %1990 = vmatpush1.bf16.msra.mxu0 0
    %1991 = vmatprep.subr.bf16.mxu0 0
    %1992 = vmatpush1.bf16.msra.mxu0 0
    %1993 = vmatprep.subr.bf16.mxu0 0
    %1994 = vmatpush1.bf16.msra.mxu0 0
    %1995 = vmatprep.subr.bf16.mxu0 0
    %1996 = vmatpush1.bf16.msra.mxu0 0
    %1997 = vmatprep.subr.bf16.mxu0 0
    %1998 = vmatpush1.bf16.msra.mxu0 0
    %1999 = vmatprep.mubr.bf16.mxu0 0
    %2000 = vmatmul.mubr.bf16.gmra.mrb[0].mxu0 %v1966
    %v2001 = vpop.f32.mrb[0].mxu0
    %v2002 = vadd.f32 0.0, %v2001
    %v2003 = vpop.f32.mrb[0].mxu0
    %v2004 = vadd.f32 0.0, %v2003
    %v2005 = vpop.f32.mrb[0].mxu0
    %v2006 = vpop.f32.mrb[0].mxu0
    %2007 = vdwg.mxu0
    %2008 = vmatprep.subr.bf16.mxu0 %v1614
    %2009 = vmatpush1.bf16.msra.mxu0 %v1613
    %2010 = vmatprep.subr.bf16.mxu0 %v1618
    %2011 = vmatpush1.bf16.msra.mxu0 %v1617
    %2012 = vmatprep.subr.bf16.mxu0 %v1622
    %2013 = vmatpush1.bf16.msra.mxu0 %v1621
    %2014 = vmatprep.subr.bf16.mxu0 %v1626
    %2015 = vmatpush1.bf16.msra.mxu0 %v1625
    %2016 = vmatprep.subr.bf16.mxu0 %v1630
    %2017 = vmatpush1.bf16.msra.mxu0 %v1629
    %2018 = vmatprep.subr.bf16.mxu0 %v1634
    %2019 = vmatpush1.bf16.msra.mxu0 %v1633
    %2020 = vmatprep.subr.bf16.mxu0 %v1638
    %2021 = vmatpush1.bf16.msra.mxu0 %v1637
    %2022 = vmatprep.subr.bf16.mxu0 %v1642
    %2023 = vmatpush1.bf16.msra.mxu0 %v1641
    %2024 = vmatprep.subr.bf16.mxu0 0
    %2025 = vmatpush1.bf16.msra.mxu0 0
    %2026 = vmatprep.subr.bf16.mxu0 0
    %2027 = vmatpush1.bf16.msra.mxu0 0
    %2028 = vmatprep.subr.bf16.mxu0 0
    %2029 = vmatpush1.bf16.msra.mxu0 0
    %2030 = vmatprep.subr.bf16.mxu0 0
    %2031 = vmatpush1.bf16.msra.mxu0 0
    %2032 = vmatprep.subr.bf16.mxu0 0
    %2033 = vmatpush1.bf16.msra.mxu0 0
    %2034 = vmatprep.subr.bf16.mxu0 0
    %2035 = vmatpush1.bf16.msra.mxu0 0
    %2036 = vmatprep.subr.bf16.mxu0 0
    %2037 = vmatpush1.bf16.msra.mxu0 0
    %2038 = vmatprep.subr.bf16.mxu0 0
    %2039 = vmatpush1.bf16.msra.mxu0 0
    %2040 = vmatprep.mubr.bf16.mxu0 0
    %2041 = vmatmul.mubr.bf16.gmra.mrb[0].mxu0 %v1966
    %v2042 = vpop.f32.mrb[0].mxu0
    %v2043 = vadd.f32 0.0, %v2042
    %v2044 = vpop.f32.mrb[0].mxu0
    %v2045 = vadd.f32 0.0, %v2044
    %v2046 = vpop.f32.mrb[0].mxu0
    %v2047 = vpop.f32.mrb[0].mxu0
    %2048 = vdwg.mxu0
    %2050 = vset.pattern.permute.xlu0 0
    %2051 = vperm.xlu0 %2050, %v1931
    %v2052 = vpop.permute.xlu0 %2051
    %v2054 = vmul.f32 %v2052, %v2002
    %2055 = vset.pattern.permute.xlu0 1
    %2056 = vperm.xlu0 %2055, %v1931
    %v2057 = vpop.permute.xlu0 %2056
    %v2059 = vmul.f32 %v2057, %v2004
    %v2060 = vadd.f32 %v2054, %v2059
    %2061 = vset.pattern.permute.xlu0 2
    %2062 = vperm.xlu0 %2061, %v1931
    %v2063 = vpop.permute.xlu0 %2062
    %v2065 = vmul.f32 %v2063, %v2043
    %v2066 = vadd.f32 %v2060, %v2065
    %2067 = vset.pattern.permute.xlu0 3
    %2068 = vperm.xlu0 %2067, %v1931
    %v2069 = vpop.permute.xlu0 %2068
    %v2071 = vmul.f32 %v2069, %v2045
    %v2072 = vadd.f32 %v2066, %v2071
    %v2073 = vld [vmem:[#allocation7] sm:$0xff]
    %v2074 = vmul.f32 %v2072, %v2073
    %2075 = vadd.xlane.f32.xlu0 %v2074
    %v2076 = vpop.xlane.xlu0 %2075
    %v2077 = vtanh.pop %v2076
    %2078 = vst [vmem:[#allocation13] sm:$0xff] %v2077
    // Predicated region
    $region58: #{tpu_custom_call.1} parent=1 // pred_check
      _
    $region59: #{tpu_custom_call.1} parent=1 // pred_check_branch
      %2080 = sbr.rel (0) target = $region61
    $region60: #{tpu_custom_call.1} parent=1 // pred_region
      %s2082 = ssub.s32 128, 128
      %2083 = vsyncadd [#allocation4], %s2082
      %s2085 = sshll.u32 [#allocation13], 4
      %s2086 = int_to_ptr.vmem [resolvable:$true] %s2085
      %2088 = dma.vmem_to_hbm [thread:$0]  %s2086, 128, %s8, [#allocation4]
    $region61: #{tpu_custom_call.1} parent=1 // pred_fallthru
      _
    // Predicated region
    $region62: #{tpu_custom_call.1} parent=1 // pred_check
      _
    $region63: #{tpu_custom_call.1} parent=1 // pred_check_branch
      %2090 = sbr.rel (0) target = $region65
    $region64: #{tpu_custom_call.1} parent=1 // pred_region
      %2091 = dma.done [#allocation4], 128
    $region65: #{tpu_custom_call.1} parent=1 // pred_fallthru
      _
    %2092 = vsyncpa [#allocation3], 1
    %2093 = vsyncpa [#allocation6], 1
    %2094 = vsyncpa [#allocation9], 1
    %2095 = vsyncpa [#allocation12], 1
    %2096 = vsyncpa [#allocation4], 1

</llo_original>
